<compile_context>
chip_gen: v7x
topology: tpu7x:2x2x1
jax: 0.10.0
libtpu: 0.0.40
codegen_flags: <defaults>
</compile_context>

<pallas_src>
import functools

import jax
import jax.numpy as jnp
from jax.experimental import pallas as pl
from jax.experimental.pallas import tpu as pltpu


_VMEM_LIMIT = 48 * 1024 * 1024  # safe on v5e/v6e (128 MiB) and v7x (64 MiB) physical VMEM


def _fit(dim, target, quantum):
    """Tile size for `dim`: largest multiple of `quantum` <= target dividing dim,
    falling back to the full dim (always a legal TPU block size)."""
    if dim <= target:
        return dim
    t = (target // quantum) * quantum
    while t >= quantum:
        if dim % t == 0:
            return t
        t -= quantum
    return dim


# --------------------------- fused QKV projection --------------------------- #

def _qkv_kernel(x_ref, w_ref, o_ref, acc_ref):
    # grid = (B, S_tiles, 3*NH, K_tiles); K is innermost reduction axis.
    @pl.when(pl.program_id(3) == 0)
    def _():
        acc_ref[...] = jnp.zeros(acc_ref.shape, acc_ref.dtype)

    # x (tm, tk) contracted with w (D, tk) on their K axes -> (tm, D).  Weight kept in
    # nn.Linear (out, in) layout; no transposed copy is ever materialized in HBM.
    acc_ref[...] += jax.lax.dot_general(
        x_ref[...], w_ref[...],
        dimension_numbers=(((1,), (1,)), ((), ())),
        preferred_element_type=jnp.float32)

    @pl.when(pl.program_id(3) == pl.num_programs(3) - 1)
    def _():
        o_ref[...] = acc_ref[...].astype(o_ref.dtype)


def _qkv_proj(x2d, wqkv, B, S, num_heads, head_dim):
    # x2d: (B*S, K), wqkv: (3*NH*D, K)  ->  (B, 3*NH, S, D) head-major
    M, K = x2d.shape
    N3 = wqkv.shape[0]
    D = head_dim
    G = N3 // D                       # 3 * num_heads
    tm = _fit(S, 256, 8)              # q_len tile (never straddles a batch boundary)
    tk = _fit(K, 512, 128)            # reduction tile
    nq = S // tm
    nk = K // tk
    itemsize = x2d.dtype.itemsize

    return pl.pallas_call(
        _qkv_kernel,
        out_shape=jax.ShapeDtypeStruct((B, G, S, D), x2d.dtype),
        grid=(B, nq, G, nk),
        in_specs=[
            pl.BlockSpec((tm, tk), lambda b, i, g, k: (b * nq + i, k)),
            pl.BlockSpec((D, tk), lambda b, i, g, k: (g, k)),
        ],
        out_specs=pl.BlockSpec((None, None, tm, D), lambda b, i, g, k: (b, g, i, 0)),
        scratch_shapes=[pltpu.VMEM((tm, D), jnp.float32)],
        compiler_params=pltpu.CompilerParams(
            dimension_semantics=("parallel", "parallel", "parallel", "arbitrary"),
            vmem_limit_bytes=_VMEM_LIMIT),
        cost_estimate=pl.CostEstimate(
            flops=2 * M * K * N3,
            transcendentals=0,
            bytes_accessed=(M * K + N3 * K + M * N3) * itemsize),
    )(x2d, wqkv)


# ------------------- flash attention with fused RoPE / causal ---------------- #

def _attn_kernel(q_ref, k_ref, v_ref, cq_ref, sq_ref, ck_ref, sk_ref, rot_ref,
                 o_ref, m_ref, l_ref, acc_ref, *, tq, tkv):
    qi = pl.program_id(2)
    ki = pl.program_id(3)

    @pl.when(ki == 0)
    def _init():
        m_ref[...] = jnp.full(m_ref.shape, -jnp.inf, jnp.float32)
        l_ref[...] = jnp.zeros(l_ref.shape, l_ref.dtype)
        acc_ref[...] = jnp.zeros(acc_ref.shape, acc_ref.dtype)

    # causal block skipping: kv tiles strictly above the diagonal contribute nothing
    @pl.when(ki * tkv < (qi + 1) * tq)
    def _update():
        rot = rot_ref[...].astype(jnp.float32)            # (D, D) rotate_half matrix
        q = q_ref[...].astype(jnp.float32)                # (tq, D)
        k = k_ref[...].astype(jnp.float32)                # (tkv, D)

        # RoPE fused in-kernel; 1/sqrt(D) is pre-folded into cq/sq (applied to q only).
        q = q * cq_ref[...] + jnp.dot(q, rot, preferred_element_type=jnp.float32) * sq_ref[...]
        k = k * ck_ref[...] + jnp.dot(k, rot, preferred_element_type=jnp.float32) * sk_ref[...]

        s = jax.lax.dot_general(                          # (tq, tkv) = q @ k^T
            q, k, (((1,), (1,)), ((), ())), preferred_element_type=jnp.float32)

        row = qi * tq + jax.lax.broadcasted_iota(jnp.int32, (tq, tkv), 0)
        col = ki * tkv + jax.lax.broadcasted_iota(jnp.int32, (tq, tkv), 1)
        s = jnp.where(col <= row, s, -1e30)

        m_prev = m_ref[...]
        m_new = jnp.maximum(m_prev, jnp.max(s, axis=-1, keepdims=True))
        alpha = jnp.exp(m_prev - m_new)
        p = jnp.exp(s - m_new)
        l_ref[...] = alpha * l_ref[...] + jnp.sum(p, axis=-1, keepdims=True)
        acc_ref[...] = alpha * acc_ref[...] + jnp.dot(
            p, v_ref[...].astype(jnp.float32), preferred_element_type=jnp.float32)
        m_ref[...] = m_new

    @pl.when(ki == pl.num_programs(3) - 1)
    def _finalize():
        inv_l = pl.reciprocal(l_ref[...], approx=True)    # EUP slot instead of VPU divide
        o_ref[...] = (acc_ref[...] * inv_l).astype(o_ref.dtype)


def _flash_attention(qkv, cos_q, sin_q, cos_k, sin_k, rot, num_heads):
    # qkv: (B, 3*NH, S, D) head-major; returns (B, NH, S, D)
    B, G, S, D = qkv.shape
    NH = num_heads
    tq = _fit(S, 256, 8)
    tkv = _fit(S, 256, 8)
    nq = S // tq
    nk = S // tkv
    itemsize = qkv.dtype.itemsize

    kernel = functools.partial(_attn_kernel, tq=tq, tkv=tkv)
    return pl.pallas_call(
        kernel,
        out_shape=jax.ShapeDtypeStruct((B, NH, S, D), qkv.dtype),
        grid=(B, NH, nq, nk),
        in_specs=[
            pl.BlockSpec((None, None, tq, D), lambda b, h, qi, ki: (b, h, qi, 0)),
            pl.BlockSpec((None, None, tkv, D), lambda b, h, qi, ki: (b, NH + h, ki, 0)),
            pl.BlockSpec((None, None, tkv, D), lambda b, h, qi, ki: (b, 2 * NH + h, ki, 0)),
            pl.BlockSpec((tq, D), lambda b, h, qi, ki: (qi, 0)),
            pl.BlockSpec((tq, D), lambda b, h, qi, ki: (qi, 0)),
            pl.BlockSpec((tkv, D), lambda b, h, qi, ki: (ki, 0)),
            pl.BlockSpec((tkv, D), lambda b, h, qi, ki: (ki, 0)),
            pl.BlockSpec((D, D), lambda b, h, qi, ki: (0, 0)),
        ],
        out_specs=pl.BlockSpec((None, None, tq, D), lambda b, h, qi, ki: (b, h, qi, 0)),
        scratch_shapes=[pltpu.VMEM((tq, 1), jnp.float32),   # running max m
                        pltpu.VMEM((tq, 1), jnp.float32),   # running sum l
                        pltpu.VMEM((tq, D), jnp.float32)],  # output accumulator
        compiler_params=pltpu.CompilerParams(
            dimension_semantics=("parallel", "parallel", "parallel", "arbitrary"),
            vmem_limit_bytes=_VMEM_LIMIT),
        cost_estimate=pl.CostEstimate(
            flops=4 * B * NH * S * S * D,
            transcendentals=B * NH * S * S,
            bytes_accessed=4 * B * NH * S * D * itemsize),
    )(qkv, qkv, qkv, cos_q, sin_q, cos_k, sin_k, rot)


# -------------------- o_proj with rectification pre-folded ------------------- #

def _oproj_kernel(a_ref, w_ref, o_ref, acc_ref):
    # grid = (B, S_tiles, N_tiles, NH); input-head axis is the innermost reduction.
    @pl.when(pl.program_id(3) == 0)
    def _():
        acc_ref[...] = jnp.zeros(acc_ref.shape, acc_ref.dtype)

    acc_ref[...] += jnp.dot(a_ref[...], w_ref[...], preferred_element_type=jnp.float32)

    @pl.when(pl.program_id(3) == pl.num_programs(3) - 1)
    def _():
        o_ref[...] = acc_ref[...].astype(o_ref.dtype)


def _o_proj(attn, wo_t):
    # attn: (B, NH, S, D) head-major, wo_t: (NH, D, H_out) -> (B, S, H_out)
    B, NH, S, D = attn.shape
    H_out = wo_t.shape[-1]
    tm = _fit(S, 256, 8)
    tn = _fit(H_out, 512, 128)
    nm = S // tm
    nn_ = H_out // tn
    itemsize = attn.dtype.itemsize

    return pl.pallas_call(
        _oproj_kernel,
        out_shape=jax.ShapeDtypeStruct((B, S, H_out), attn.dtype),
        grid=(B, nm, nn_, NH),
        in_specs=[
            pl.BlockSpec((None, None, tm, D), lambda b, i, j, h: (b, h, i, 0)),
            pl.BlockSpec((None, D, tn), lambda b, i, j, h: (h, 0, j)),
        ],
        out_specs=pl.BlockSpec((None, tm, tn), lambda b, i, j, h: (b, i, j)),
        scratch_shapes=[pltpu.VMEM((tm, tn), jnp.float32)],
        compiler_params=pltpu.CompilerParams(
            dimension_semantics=("parallel", "parallel", "parallel", "arbitrary"),
            vmem_limit_bytes=_VMEM_LIMIT),
        cost_estimate=pl.CostEstimate(
            flops=2 * B * S * NH * D * H_out,
            transcendentals=0,
            bytes_accessed=(B * S * NH * D + NH * D * H_out + B * S * H_out) * itemsize),
    )(attn, wo_t)


# ------------------------------- JAX glue / init ----------------------------- #

def _rope_cos_sin(seq_len, dim, theta=10000.0):
    inv_freq = 1.0 / (theta ** (jnp.arange(0, dim, 2, dtype=jnp.float32) / dim))
    pos = jnp.arange(seq_len, dtype=jnp.float32)          # position_ids = arange
    freqs = pos[:, None] * inv_freq[None, :]
    emb = jnp.concatenate([freqs, freqs], axis=-1)
    return jnp.cos(emb), jnp.sin(emb)                      # (S, D) each


def _rotate_half(x):
    d = x.shape[-1] // 2
    return jnp.concatenate([-x[..., d:], x[..., :d]], axis=-1)


def _rotate_half_matrix(dim, dtype=jnp.float32):
    # x @ R == rotate_half(x); avoids in-kernel lane slicing/concat for any head_dim.
    half = dim // 2
    eye = jnp.eye(half, dtype=dtype)
    z = jnp.zeros((half, half), dtype)
    return jnp.concatenate(
        [jnp.concatenate([z, eye], axis=1),
         jnp.concatenate([-eye, z], axis=1)], axis=0)


def prepare_params(wq, wk, wv, wo, *, num_heads, head_dim, fixed_head_idx, coefficient):
    """One-time init: fuse QKV weights and fold the rectification into o_proj."""
    if not -num_heads <= fixed_head_idx < num_heads:
        raise ValueError(
            f"fixed_head_idx should be in the range [{-num_heads}, {num_heads})")
    if not 0.0 <= coefficient <= 1.0:
        raise ValueError("coefficient should be in the range [0, 1]")
    # TODO(synk): for negative fixed_head_idx the original in-place slicing double-scales
    # some heads; here a negative index is normalised to the intended single fixed head.
    fixed = fixed_head_idx % num_heads

    wqkv = jnp.concatenate([wq, wk, wv], axis=0)           # (3H, H), nn.Linear layout
    h_out = wo.shape[0]
    head_of_row = jnp.arange(h_out) // head_dim
    scale = jnp.where(head_of_row == fixed, 1.0, coefficient).astype(wo.dtype)
    wo_scaled = wo * scale[:, None]                        # scale output head columns
    # one-time re-layout to (NH_in, D, H_out) so o_proj consumes head-major attention
    # output with no runtime transpose.
    wo_t = jnp.transpose(wo_scaled.reshape(h_out, num_heads, head_dim), (1, 2, 0))
    return wqkv, wo_t


@functools.partial(jax.jit, static_argnames=("num_heads", "head_dim"))
def rectified_attention_forward(hidden_states, wqkv, wo_t, *, num_heads, head_dim):
    B, S, H = hidden_states.shape
    assert H == num_heads * head_dim
    x2d = hidden_states.reshape(B * S, H)

    # fused QKV projection, head-major output (Pallas)
    qkv = _qkv_proj(x2d, wqkv, B, S, num_heads, head_dim)  # (B, 3*NH, S, D)

    # RoPE tables (constant-folded by XLA); 1/sqrt(D) folded into q's cos/sin
    cos, sin = _rope_cos_sin(S, head_dim)
    inv_sqrt_d = 1.0 / (head_dim ** 0.5)
    rot = _rotate_half_matrix(head_dim)

    # causal flash attention with fused RoPE (Pallas)
    attn = _flash_attention(qkv, cos * inv_sqrt_d, sin * inv_sqrt_d,
                            cos, sin, rot, num_heads)       # (B, NH, S, D)

    # o_proj + rectification (pre-folded into wo_t) (Pallas)
    return _o_proj(attn, wo_t)                               # (B, S, H)


# --------------------------------- reference --------------------------------- #

def reference_forward(x, params, num_heads, head_dim, fixed_head_idx, coefficient):
    B, S, H = x.shape

    def heads(t):
        return t.reshape(B, S, num_heads, head_dim).transpose(0, 2, 1, 3)

    q = heads(x @ params["wq"].T)
    k = heads(x @ params["wk"].T)
    v = heads(x @ params["wv"].T)
    cos, sin = _rope_cos_sin(S, head_dim)
    q = q * cos + _rotate_half(q) * sin
    k = k * cos + _rotate_half(k) * sin
    scores = jnp.einsum("bhqd,bhkd->bhqk", q, k) / (head_dim ** 0.5)
    mask = jnp.tril(jnp.ones((S, S), bool))
    scores = jnp.where(mask, scores, -1e30)
    p = jax.nn.softmax(scores, axis=-1)
    attn = jnp.einsum("bhqk,bhkd->bhqd", p, v).transpose(0, 2, 1, 3).reshape(B, S, H)
    out = attn @ params["wo"].T
    scale = jnp.where(jnp.arange(num_heads) == (fixed_head_idx % num_heads),
                      1.0, coefficient)
    out = out.reshape(B, S, num_heads, head_dim) * scale[None, None, :, None]
    return out.reshape(B, S, H)


# ----------------------------------- main ------------------------------------ #

if __name__ == "__main__":
    # Small shapes implied by the module: bsz=2, q_len=8, hidden=32, heads=4, head_dim=8
    B, S, H = 2, 8, 32
    NUM_HEADS, HEAD_DIM = 4, H // 4
    FIXED_HEAD_IDX = 1
    COEFFICIENT = 0.5

    key = jax.random.PRNGKey(0)
    kx, kq, kk, kv, ko = jax.random.split(key, 5)
    hidden_states = jax.random.normal(kx, (B, S, H), jnp.float32)
    params = {  # nn.Linear weights, shape (out_features, in_features), no bias
        "wq": 0.02 * jax.random.normal(kq, (H, H), jnp.float32),
        "wk": 0.02 * jax.random.normal(kk, (H, H), jnp.float32),
        "wv": 0.02 * jax.random.normal(kv, (H, H), jnp.float32),
        "wo": 0.02 * jax.random.normal(ko, (H, H), jnp.float32),
    }

    # one-time init: fuse QKV weights, fold rectification into o_proj weight
    wqkv, wo_t = prepare_params(
        params["wq"], params["wk"], params["wv"], params["wo"],
        num_heads=NUM_HEADS, head_dim=HEAD_DIM,
        fixed_head_idx=FIXED_HEAD_IDX, coefficient=COEFFICIENT)

    out = rectified_attention_forward(
        hidden_states, wqkv, wo_t, num_heads=NUM_HEADS, head_dim=HEAD_DIM)
    out = jax.block_until_ready(out)

    ref = reference_forward(hidden_states, params, NUM_HEADS, HEAD_DIM,
                            FIXED_HEAD_IDX, COEFFICIENT)
    assert out.shape == (B, S, H)
    assert jnp.allclose(out, ref, atol=5e-3, rtol=5e-3)

    # TODO(synk): output_attentions=True raises NotImplementedError in the reference
    # module; KV-cache (past_key_value/use_cache) and non-None attention_mask are not
    # modeled. For production, pass bf16 activations/weights (kernels accumulate in f32).
    print("KERNEL_OK")
</pallas_src>

<mosaic_0001>
module attributes {stable_mosaic.version = 11 : i64} {
  func.func @_qkv_kernel(%arg0: i32, %arg1: i32, %arg2: i32, %arg3: i32, %arg4: memref<8x32xf32, #tpu.memory_space<vmem>>, %arg5: memref<8x32xf32, #tpu.memory_space<vmem>>, %arg6: memref<1x1x8x8xf32, #tpu.memory_space<vmem>>, %arg7: memref<8x8xf32, #tpu.memory_space<vmem>>) attributes {dimension_semantics = [#tpu.dimension_semantics<parallel>, #tpu.dimension_semantics<parallel>, #tpu.dimension_semantics<parallel>, #tpu.dimension_semantics<arbitrary>], iteration_bounds = array<i64: 2, 1, 12, 1>, scalar_prefetch = 0 : i64, scratch_operands = 1 : i64, tpu.core_type = #tpu.core_type<tc>, window_params = [{transform_indices = @transform_0, window_bounds = array<i64: 8, 32>}, {transform_indices = @transform_1, window_bounds = array<i64: 8, 32>}, {transform_indices = @transform_2, window_bounds = array<i64: 1, 1, 8, 8>}]} {
    %c0_i32 = arith.constant 0 : i32
    %0 = arith.cmpi eq, %arg3, %c0_i32 : i32
    %1 = arith.extui %0 : i1 to i32
    %c0_i32_0 = arith.constant 0 : i32
    %2 = arith.cmpi ne, %1, %c0_i32_0 : i32
    scf.if %2 {
      %cst_10 = arith.constant 0.000000e+00 : f32
      %12 = vector.broadcast %cst_10 : f32 to vector<8x8xf32>
      %c0_11 = arith.constant 0 : index
      %c0_12 = arith.constant 0 : index
      %13 = vector.load %arg7[%c0_11, %c0_12] : memref<8x8xf32, #tpu.memory_space<vmem>>, vector<8x8xf32>
      tpu.vector_store %arg7[%c0_11, %c0_12], %12 {strides = array<i32>} : memref<8x8xf32, #tpu.memory_space<vmem>>, vector<8x8xf32>,
    } else {
    }
    %c0 = arith.constant 0 : index
    %c0_1 = arith.constant 0 : index
    %3 = vector.load %arg7[%c0, %c0_1] : memref<8x8xf32, #tpu.memory_space<vmem>>, vector<8x8xf32>
    %c0_2 = arith.constant 0 : index
    %c0_3 = arith.constant 0 : index
    %4 = vector.load %arg4[%c0_2, %c0_3] : memref<8x32xf32, #tpu.memory_space<vmem>>, vector<8x32xf32>
    %c0_4 = arith.constant 0 : index
    %c0_5 = arith.constant 0 : index
    %5 = vector.load %arg5[%c0_4, %c0_5] : memref<8x32xf32, #tpu.memory_space<vmem>>, vector<8x32xf32>
    %cst = arith.constant dense<0.000000e+00> : vector<8x8xf32>
    %6 = tpu.matmul %4, %5, %cst {dimension_numbers = #tpu.dot_dimension_numbers<[1], [1], [0], [0], [0, 0, 1, 0], [], []>} : vector<8x32xf32>, vector<8x32xf32>, vector<8x8xf32> -> vector<8x8xf32>
    %7 = arith.addf %3, %6 : vector<8x8xf32>
    %c0_6 = arith.constant 0 : index
    %c0_7 = arith.constant 0 : index
    %8 = vector.load %arg7[%c0_6, %c0_7] : memref<8x8xf32, #tpu.memory_space<vmem>>, vector<8x8xf32>
    tpu.vector_store %arg7[%c0_6, %c0_7], %7 {strides = array<i32>} : memref<8x8xf32, #tpu.memory_space<vmem>>, vector<8x8xf32>,
    %c0_i32_8 = arith.constant 0 : i32
    %9 = arith.cmpi eq, %arg3, %c0_i32_8 : i32
    %10 = arith.extui %9 : i1 to i32
    %c0_i32_9 = arith.constant 0 : i32
    %11 = arith.cmpi ne, %10, %c0_i32_9 : i32
    scf.if %11 {
      %c0_10 = arith.constant 0 : index
      %c0_11 = arith.constant 0 : index
      %12 = vector.load %arg7[%c0_10, %c0_11] : memref<8x8xf32, #tpu.memory_space<vmem>>, vector<8x8xf32>
      %c0_12 = arith.constant 0 : index
      %c0_13 = arith.constant 0 : index
      %c0_14 = arith.constant 0 : index
      %c0_15 = arith.constant 0 : index
      %13 = vector.load %arg6[%c0_12, %c0_13, %c0_14, %c0_15] : memref<1x1x8x8xf32, #tpu.memory_space<vmem>>, vector<1x1x8x8xf32>
      %14 = vector.shape_cast %13 : vector<1x1x8x8xf32> to vector<8x8xf32>
      %15 = vector.shape_cast %12 : vector<8x8xf32> to vector<1x1x8x8xf32>
      tpu.vector_store %arg6[%c0_12, %c0_13, %c0_14, %c0_15], %15 {strides = array<i32>} : memref<1x1x8x8xf32, #tpu.memory_space<vmem>>, vector<1x1x8x8xf32>,
    } else {
    }
    return
  }
  func.func @transform_0(%arg0: i32, %arg1: i32, %arg2: i32, %arg3: i32) -> (i32, i32) {
    %c1_i32 = arith.constant 1 : i32
    %0 = arith.muli %arg0, %c1_i32 : i32
    %1 = arith.addi %0, %arg1 : i32
    %c0_i32 = arith.constant 0 : i32
    return %1, %arg3 : i32, i32
  }
  func.func @transform_1(%arg0: i32, %arg1: i32, %arg2: i32, %arg3: i32) -> (i32, i32) {
    %c0_i32 = arith.constant 0 : i32
    return %arg2, %arg3 : i32, i32
  }
  func.func @transform_2(%arg0: i32, %arg1: i32, %arg2: i32, %arg3: i32) -> (i32, i32, i32, i32) {
    %c0_i32 = arith.constant 0 : i32
    %c0_i32_0 = arith.constant 0 : i32
    return %arg0, %arg2, %arg1, %c0_i32 : i32, i32, i32, i32
  }
}

module attributes {stable_mosaic.version = 11 : i64} {
  func.func @_oproj_kernel(%arg0: i32, %arg1: i32, %arg2: i32, %arg3: i32, %arg4: memref<1x1x8x8xf32, #tpu.memory_space<vmem>>, %arg5: memref<1x8x32xf32, #tpu.memory_space<vmem>>, %arg6: memref<1x8x32xf32, #tpu.memory_space<vmem>>, %arg7: memref<8x32xf32, #tpu.memory_space<vmem>>) attributes {dimension_semantics = [#tpu.dimension_semantics<parallel>, #tpu.dimension_semantics<parallel>, #tpu.dimension_semantics<parallel>, #tpu.dimension_semantics<arbitrary>], iteration_bounds = array<i64: 2, 1, 1, 4>, scalar_prefetch = 0 : i64, scratch_operands = 1 : i64, tpu.core_type = #tpu.core_type<tc>, window_params = [{transform_indices = @transform_0, window_bounds = array<i64: 1, 1, 8, 8>}, {transform_indices = @transform_1, window_bounds = array<i64: 1, 8, 32>}, {transform_indices = @transform_2, window_bounds = array<i64: 1, 8, 32>}]} {
    %c0_i32 = arith.constant 0 : i32
    %0 = arith.cmpi eq, %arg3, %c0_i32 : i32
    %1 = arith.extui %0 : i1 to i32
    %c0_i32_0 = arith.constant 0 : i32
    %2 = arith.cmpi ne, %1, %c0_i32_0 : i32
    scf.if %2 {
      %cst_12 = arith.constant 0.000000e+00 : f32
      %14 = vector.broadcast %cst_12 : f32 to vector<8x32xf32>
      %c0_13 = arith.constant 0 : index
      %c0_14 = arith.constant 0 : index
      %15 = vector.load %arg7[%c0_13, %c0_14] : memref<8x32xf32, #tpu.memory_space<vmem>>, vector<8x32xf32>
      tpu.vector_store %arg7[%c0_13, %c0_14], %14 {strides = array<i32>} : memref<8x32xf32, #tpu.memory_space<vmem>>, vector<8x32xf32>,
    } else {
    }
    %c0 = arith.constant 0 : index
    %c0_1 = arith.constant 0 : index
    %3 = vector.load %arg7[%c0, %c0_1] : memref<8x32xf32, #tpu.memory_space<vmem>>, vector<8x32xf32>
    %c0_2 = arith.constant 0 : index
    %c0_3 = arith.constant 0 : index
    %c0_4 = arith.constant 0 : index
    %c0_5 = arith.constant 0 : index
    %4 = vector.load %arg4[%c0_2, %c0_3, %c0_4, %c0_5] : memref<1x1x8x8xf32, #tpu.memory_space<vmem>>, vector<1x1x8x8xf32>
    %5 = vector.shape_cast %4 : vector<1x1x8x8xf32> to vector<8x8xf32>
    %c0_6 = arith.constant 0 : index
    %c0_7 = arith.constant 0 : index
    %c0_8 = arith.constant 0 : index
    %6 = vector.load %arg5[%c0_6, %c0_7, %c0_8] : memref<1x8x32xf32, #tpu.memory_space<vmem>>, vector<1x8x32xf32>
    %7 = vector.shape_cast %6 : vector<1x8x32xf32> to vector<8x32xf32>
    %cst = arith.constant dense<0.000000e+00> : vector<8x32xf32>
    %8 = tpu.matmul %5, %7, %cst {dimension_numbers = #tpu.dot_dimension_numbers<[1], [0], [0], [1], [0, 0, 1, 1], [], []>} : vector<8x8xf32>, vector<8x32xf32>, vector<8x32xf32> -> vector<8x32xf32>
    %9 = arith.addf %3, %8 : vector<8x32xf32>
    %c0_9 = arith.constant 0 : index
    %c0_10 = arith.constant 0 : index
    %10 = vector.load %arg7[%c0_9, %c0_10] : memref<8x32xf32, #tpu.memory_space<vmem>>, vector<8x32xf32>
    tpu.vector_store %arg7[%c0_9, %c0_10], %9 {strides = array<i32>} : memref<8x32xf32, #tpu.memory_space<vmem>>, vector<8x32xf32>,
    %c3_i32 = arith.constant 3 : i32
    %11 = arith.cmpi eq, %arg3, %c3_i32 : i32
    %12 = arith.extui %11 : i1 to i32
    %c0_i32_11 = arith.constant 0 : i32
    %13 = arith.cmpi ne, %12, %c0_i32_11 : i32
    scf.if %13 {
      %c0_12 = arith.constant 0 : index
      %c0_13 = arith.constant 0 : index
      %14 = vector.load %arg7[%c0_12, %c0_13] : memref<8x32xf32, #tpu.memory_space<vmem>>, vector<8x32xf32>
      %c0_14 = arith.constant 0 : index
      %c0_15 = arith.constant 0 : index
      %c0_16 = arith.constant 0 : index
      %15 = vector.load %arg6[%c0_14, %c0_15, %c0_16] : memref<1x8x32xf32, #tpu.memory_space<vmem>>, vector<1x8x32xf32>
      %16 = vector.shape_cast %15 : vector<1x8x32xf32> to vector<8x32xf32>
      %17 = vector.shape_cast %14 : vector<8x32xf32> to vector<1x8x32xf32>
      tpu.vector_store %arg6[%c0_14, %c0_15, %c0_16], %17 {strides = array<i32>} : memref<1x8x32xf32, #tpu.memory_space<vmem>>, vector<1x8x32xf32>,
    } else {
    }
    return
  }
  func.func @transform_0(%arg0: i32, %arg1: i32, %arg2: i32, %arg3: i32) -> (i32, i32, i32, i32) {
    %c0_i32 = arith.constant 0 : i32
    %c0_i32_0 = arith.constant 0 : i32
    return %arg0, %arg3, %arg1, %c0_i32 : i32, i32, i32, i32
  }
  func.func @transform_1(%arg0: i32, %arg1: i32, %arg2: i32, %arg3: i32) -> (i32, i32, i32) {
    %c0_i32 = arith.constant 0 : i32
    %c0_i32_0 = arith.constant 0 : i32
    return %arg3, %c0_i32, %arg2 : i32, i32, i32
  }
  func.func @transform_2(%arg0: i32, %arg1: i32, %arg2: i32, %arg3: i32) -> (i32, i32, i32) {
    %c0_i32 = arith.constant 0 : i32
    return %arg0, %arg1, %arg2 : i32, i32, i32
  }
}

module attributes {stable_mosaic.version = 11 : i64} {
  func.func @_attn_kernel(%arg0: i32, %arg1: i32, %arg2: i32, %arg3: i32, %arg4: memref<1x1x8x8xf32, #tpu.memory_space<vmem>>, %arg5: memref<1x1x8x8xf32, #tpu.memory_space<vmem>>, %arg6: memref<1x1x8x8xf32, #tpu.memory_space<vmem>>, %arg7: memref<8x8xf32, #tpu.memory_space<vmem>>, %arg8: memref<8x8xf32, #tpu.memory_space<vmem>>, %arg9: memref<8x8xf32, #tpu.memory_space<vmem>>, %arg10: memref<8x8xf32, #tpu.memory_space<vmem>>, %arg11: memref<8x8xf32, #tpu.memory_space<vmem>>, %arg12: memref<1x1x8x8xf32, #tpu.memory_space<vmem>>, %arg13: memref<8x1xf32, #tpu.memory_space<vmem>>, %arg14: memref<8x1xf32, #tpu.memory_space<vmem>>, %arg15: memref<8x8xf32, #tpu.memory_space<vmem>>) attributes {dimension_semantics = [#tpu.dimension_semantics<parallel>, #tpu.dimension_semantics<parallel>, #tpu.dimension_semantics<parallel>, #tpu.dimension_semantics<arbitrary>], iteration_bounds = array<i64: 2, 4, 1, 1>, scalar_prefetch = 0 : i64, scratch_operands = 3 : i64, tpu.core_type = #tpu.core_type<tc>, window_params = [{transform_indices = @transform_0, window_bounds = array<i64: 1, 1, 8, 8>}, {transform_indices = @transform_1, window_bounds = array<i64: 1, 1, 8, 8>}, {transform_indices = @transform_2, window_bounds = array<i64: 1, 1, 8, 8>}, {transform_indices = @transform_3, window_bounds = array<i64: 8, 8>}, {transform_indices = @transform_4, window_bounds = array<i64: 8, 8>}, {transform_indices = @transform_5, window_bounds = array<i64: 8, 8>}, {transform_indices = @transform_6, window_bounds = array<i64: 8, 8>}, {pipeline_mode = #tpu.pipeline_mode<synchronous>, transform_indices = @transform_7, window_bounds = array<i64: 8, 8>}, {transform_indices = @transform_8, window_bounds = array<i64: 1, 1, 8, 8>}]} {
    %c0_i32 = arith.constant 0 : i32
    %0 = arith.cmpi eq, %arg3, %c0_i32 : i32
    %1 = arith.extui %0 : i1 to i32
    %c0_i32_0 = arith.constant 0 : i32
    %2 = arith.cmpi ne, %1, %c0_i32_0 : i32
    scf.if %2 {
      %cst = arith.constant 0xFF800000 : f32
      %12 = vector.broadcast %cst : f32 to vector<8x1xf32>
      %c0 = arith.constant 0 : index
      %c0_5 = arith.constant 0 : index
      %13 = vector.load %arg13[%c0, %c0_5] : memref<8x1xf32, #tpu.memory_space<vmem>>, vector<8x1xf32>
      tpu.vector_store %arg13[%c0, %c0_5], %12 {strides = array<i32>} : memref<8x1xf32, #tpu.memory_space<vmem>>, vector<8x1xf32>,
      %cst_6 = arith.constant 0.000000e+00 : f32
      %14 = vector.broadcast %cst_6 : f32 to vector<8x1xf32>
      %c0_7 = arith.constant 0 : index
      %c0_8 = arith.constant 0 : index
      %15 = vector.load %arg14[%c0_7, %c0_8] : memref<8x1xf32, #tpu.memory_space<vmem>>, vector<8x1xf32>
      tpu.vector_store %arg14[%c0_7, %c0_8], %14 {strides = array<i32>} : memref<8x1xf32, #tpu.memory_space<vmem>>, vector<8x1xf32>,
      %cst_9 = arith.constant 0.000000e+00 : f32
      %16 = vector.broadcast %cst_9 : f32 to vector<8x8xf32>
      %c0_10 = arith.constant 0 : index
      %c0_11 = arith.constant 0 : index
      %17 = vector.load %arg15[%c0_10, %c0_11] : memref<8x8xf32, #tpu.memory_space<vmem>>, vector<8x8xf32>
      tpu.vector_store %arg15[%c0_10, %c0_11], %16 {strides = array<i32>} : memref<8x8xf32, #tpu.memory_space<vmem>>, vector<8x8xf32>,
    } else {
    }
    %c8_i32 = arith.constant 8 : i32
    %3 = arith.muli %arg3, %c8_i32 : i32
    %c1_i32 = arith.constant 1 : i32
    %4 = arith.addi %arg2, %c1_i32 : i32
    %c8_i32_1 = arith.constant 8 : i32
    %5 = arith.muli %4, %c8_i32_1 : i32
    %6 = arith.cmpi slt, %3, %5 : i32
    %7 = arith.extui %6 : i1 to i32
    %c0_i32_2 = arith.constant 0 : i32
    %8 = arith.cmpi ne, %7, %c0_i32_2 : i32
    scf.if %8 {
      %c0 = arith.constant 0 : index
      %c0_5 = arith.constant 0 : index
      %12 = vector.load %arg11[%c0, %c0_5] : memref<8x8xf32, #tpu.memory_space<vmem>>, vector<8x8xf32>
      %c0_6 = arith.constant 0 : index
      %c0_7 = arith.constant 0 : index
      %c0_8 = arith.constant 0 : index
      %c0_9 = arith.constant 0 : index
      %13 = vector.load %arg4[%c0_6, %c0_7, %c0_8, %c0_9] : memref<1x1x8x8xf32, #tpu.memory_space<vmem>>, vector<1x1x8x8xf32>
      %14 = vector.shape_cast %13 : vector<1x1x8x8xf32> to vector<8x8xf32>
      %c0_10 = arith.constant 0 : index
      %c0_11 = arith.constant 0 : index
      %c0_12 = arith.constant 0 : index
      %c0_13 = arith.constant 0 : index
      %15 = vector.load %arg5[%c0_10, %c0_11, %c0_12, %c0_13] : memref<1x1x8x8xf32, #tpu.memory_space<vmem>>, vector<1x1x8x8xf32>
      %16 = vector.shape_cast %15 : vector<1x1x8x8xf32> to vector<8x8xf32>
      %c0_14 = arith.constant 0 : index
      %c0_15 = arith.constant 0 : index
      %17 = vector.load %arg7[%c0_14, %c0_15] : memref<8x8xf32, #tpu.memory_space<vmem>>, vector<8x8xf32>
      %18 = arith.mulf %14, %17 : vector<8x8xf32>
      %cst = arith.constant dense<0.000000e+00> : vector<8x8xf32>
      %19 = tpu.matmul %14, %12, %cst {dimension_numbers = #tpu.dot_dimension_numbers<[1], [0], [0], [1], [0, 0, 1, 1], [], []>} : vector<8x8xf32>, vector<8x8xf32>, vector<8x8xf32> -> vector<8x8xf32>
      %c0_16 = arith.constant 0 : index
      %c0_17 = arith.constant 0 : index
      %20 = vector.load %arg8[%c0_16, %c0_17] : memref<8x8xf32, #tpu.memory_space<vmem>>, vector<8x8xf32>
      %21 = arith.mulf %19, %20 : vector<8x8xf32>
      %22 = arith.addf %18, %21 : vector<8x8xf32>
      %c0_18 = arith.constant 0 : index
      %c0_19 = arith.constant 0 : index
      %23 = vector.load %arg9[%c0_18, %c0_19] : memref<8x8xf32, #tpu.memory_space<vmem>>, vector<8x8xf32>
      %24 = arith.mulf %16, %23 : vector<8x8xf32>
      %cst_20 = arith.constant dense<0.000000e+00> : vector<8x8xf32>
      %25 = tpu.matmul %16, %12, %cst_20 {dimension_numbers = #tpu.dot_dimension_numbers<[1], [0], [0], [1], [0, 0, 1, 1], [], []>} : vector<8x8xf32>, vector<8x8xf32>, vector<8x8xf32> -> vector<8x8xf32>
      %c0_21 = arith.constant 0 : index
      %c0_22 = arith.constant 0 : index
      %26 = vector.load %arg10[%c0_21, %c0_22] : memref<8x8xf32, #tpu.memory_space<vmem>>, vector<8x8xf32>
      %27 = arith.mulf %25, %26 : vector<8x8xf32>
      %28 = arith.addf %24, %27 : vector<8x8xf32>
      %cst_23 = arith.constant dense<0.000000e+00> : vector<8x8xf32>
      %29 = tpu.matmul %22, %28, %cst_23 {dimension_numbers = #tpu.dot_dimension_numbers<[1], [1], [0], [0], [0, 0, 1, 0], [], []>} : vector<8x8xf32>, vector<8x8xf32>, vector<8x8xf32> -> vector<8x8xf32>
      %c8_i32_24 = arith.constant 8 : i32
      %30 = arith.muli %arg2, %c8_i32_24 : i32
      %31 = tpu.iota {dimensions = array<i32: 0>} : vector<8x8xi32>
      %32 = vector.broadcast %30 : i32 to vector<8x8xi32>
      %33 = arith.addi %32, %31 : vector<8x8xi32>
      %c8_i32_25 = arith.constant 8 : i32
      %34 = arith.muli %arg3, %c8_i32_25 : i32
      %35 = tpu.iota {dimensions = array<i32: 1>} : vector<8x8xi32>
      %36 = vector.broadcast %34 : i32 to vector<8x8xi32>
      %37 = arith.addi %36, %35 : vector<8x8xi32>
      %38 = arith.cmpi sle, %37, %33 : vector<8x8xi32>
      %cst_26 = arith.constant -1.000000e+30 : f32
      %39 = vector.broadcast %cst_26 : f32 to vector<8x8xf32>
      %40 = arith.select %38, %29, %39 : vector<8x8xi1>, vector<8x8xf32>
      %c0_27 = arith.constant 0 : index
      %c0_28 = arith.constant 0 : index
      %41 = vector.load %arg13[%c0_27, %c0_28] : memref<8x1xf32, #tpu.memory_space<vmem>>, vector<8x1xf32>
      %cst_29 = arith.constant dense<0xFF800000> : vector<8xf32>
      %42 = vector.multi_reduction <maximumf>, %40, %cst_29 [1] : vector<8x8xf32> to vector<8xf32>
      %43 = vector.shape_cast %42 : vector<8xf32> to vector<8x1xf32>
      %44 = arith.maximumf %41, %43 : vector<8x1xf32>
      %45 = arith.subf %41, %44 : vector<8x1xf32>
      %46 = math.exp %45 : vector<8x1xf32>
      %47 = vector.broadcast %44 : vector<8x1xf32> to vector<8x8xf32>
      %48 = arith.subf %40, %47 : vector<8x8xf32>
      %49 = math.exp %48 : vector<8x8xf32>
      %c0_30 = arith.constant 0 : index
      %c0_31 = arith.constant 0 : index
      %50 = vector.load %arg14[%c0_30, %c0_31] : memref<8x1xf32, #tpu.memory_space<vmem>>, vector<8x1xf32>
      %51 = arith.mulf %46, %50 : vector<8x1xf32>
      %cst_32 = arith.constant dense<0.000000e+00> : vector<8xf32>
      %52 = vector.multi_reduction <add>, %49, %cst_32 [1] : vector<8x8xf32> to vector<8xf32>
      %53 = vector.shape_cast %52 : vector<8xf32> to vector<8x1xf32>
      %54 = arith.addf %51, %53 : vector<8x1xf32>
      %c0_33 = arith.constant 0 : index
      %c0_34 = arith.constant 0 : index
      %55 = vector.load %arg14[%c0_33, %c0_34] : memref<8x1xf32, #tpu.memory_space<vmem>>, vector<8x1xf32>
      tpu.vector_store %arg14[%c0_33, %c0_34], %54 {strides = array<i32>} : memref<8x1xf32, #tpu.memory_space<vmem>>, vector<8x1xf32>,
      %c0_35 = arith.constant 0 : index
      %c0_36 = arith.constant 0 : index
      %56 = vector.load %arg15[%c0_35, %c0_36] : memref<8x8xf32, #tpu.memory_space<vmem>>, vector<8x8xf32>
      %57 = vector.broadcast %46 : vector<8x1xf32> to vector<8x8xf32>
      %58 = arith.mulf %57, %56 : vector<8x8xf32>
      %c0_37 = arith.constant 0 : index
      %c0_38 = arith.constant 0 : index
      %c0_39 = arith.constant 0 : index
      %c0_40 = arith.constant 0 : index
      %59 = vector.load %arg6[%c0_37, %c0_38, %c0_39, %c0_40] : memref<1x1x8x8xf32, #tpu.memory_space<vmem>>, vector<1x1x8x8xf32>
      %60 = vector.shape_cast %59 : vector<1x1x8x8xf32> to vector<8x8xf32>
      %cst_41 = arith.constant dense<0.000000e+00> : vector<8x8xf32>
      %61 = tpu.matmul %49, %60, %cst_41 {dimension_numbers = #tpu.dot_dimension_numbers<[1], [0], [0], [1], [0, 0, 1, 1], [], []>} : vector<8x8xf32>, vector<8x8xf32>, vector<8x8xf32> -> vector<8x8xf32>
      %62 = arith.addf %58, %61 : vector<8x8xf32>
      %c0_42 = arith.constant 0 : index
      %c0_43 = arith.constant 0 : index
      %63 = vector.load %arg15[%c0_42, %c0_43] : memref<8x8xf32, #tpu.memory_space<vmem>>, vector<8x8xf32>
      tpu.vector_store %arg15[%c0_42, %c0_43], %62 {strides = array<i32>} : memref<8x8xf32, #tpu.memory_space<vmem>>, vector<8x8xf32>,
      %c0_44 = arith.constant 0 : index
      %c0_45 = arith.constant 0 : index
      %64 = vector.load %arg13[%c0_44, %c0_45] : memref<8x1xf32, #tpu.memory_space<vmem>>, vector<8x1xf32>
      tpu.vector_store %arg13[%c0_44, %c0_45], %44 {strides = array<i32>} : memref<8x1xf32, #tpu.memory_space<vmem>>, vector<8x1xf32>,
    } else {
    }
    %c0_i32_3 = arith.constant 0 : i32
    %9 = arith.cmpi eq, %arg3, %c0_i32_3 : i32
    %10 = arith.extui %9 : i1 to i32
    %c0_i32_4 = arith.constant 0 : i32
    %11 = arith.cmpi ne, %10, %c0_i32_4 : i32
    scf.if %11 {
      %c0 = arith.constant 0 : index
      %c0_5 = arith.constant 0 : index
      %12 = vector.load %arg14[%c0, %c0_5] : memref<8x1xf32, #tpu.memory_space<vmem>>, vector<8x1xf32>
      %13 = tpu.reciprocal %12 {approx = true} : vector<8x1xf32> -> vector<8x1xf32>
      %c0_6 = arith.constant 0 : index
      %c0_7 = arith.constant 0 : index
      %14 = vector.load %arg15[%c0_6, %c0_7] : memref<8x8xf32, #tpu.memory_space<vmem>>, vector<8x8xf32>
      %15 = vector.broadcast %13 : vector<8x1xf32> to vector<8x8xf32>
      %16 = arith.mulf %14, %15 : vector<8x8xf32>
      %c0_8 = arith.constant 0 : index
      %c0_9 = arith.constant 0 : index
      %c0_10 = arith.constant 0 : index
      %c0_11 = arith.constant 0 : index
      %17 = vector.load %arg12[%c0_8, %c0_9, %c0_10, %c0_11] : memref<1x1x8x8xf32, #tpu.memory_space<vmem>>, vector<1x1x8x8xf32>
      %18 = vector.shape_cast %17 : vector<1x1x8x8xf32> to vector<8x8xf32>
      %19 = vector.shape_cast %16 : vector<8x8xf32> to vector<1x1x8x8xf32>
      tpu.vector_store %arg12[%c0_8, %c0_9, %c0_10, %c0_11], %19 {strides = array<i32>} : memref<1x1x8x8xf32, #tpu.memory_space<vmem>>, vector<1x1x8x8xf32>,
    } else {
    }
    return
  }
  func.func @transform_0(%arg0: i32, %arg1: i32, %arg2: i32, %arg3: i32) -> (i32, i32, i32, i32) {
    %c0_i32 = arith.constant 0 : i32
    %c0_i32_0 = arith.constant 0 : i32
    return %arg0, %arg1, %arg2, %c0_i32 : i32, i32, i32, i32
  }
  func.func @transform_1(%arg0: i32, %arg1: i32, %arg2: i32, %arg3: i32) -> (i32, i32, i32, i32) {
    %c4_i32 = arith.constant 4 : i32
    %0 = arith.addi %c4_i32, %arg1 : i32
    %c0_i32 = arith.constant 0 : i32
    %c0_i32_0 = arith.constant 0 : i32
    return %arg0, %0, %arg3, %c0_i32 : i32, i32, i32, i32
  }
  func.func @transform_2(%arg0: i32, %arg1: i32, %arg2: i32, %arg3: i32) -> (i32, i32, i32, i32) {
    %c8_i32 = arith.constant 8 : i32
    %0 = arith.addi %c8_i32, %arg1 : i32
    %c0_i32 = arith.constant 0 : i32
    %c0_i32_0 = arith.constant 0 : i32
    return %arg0, %0, %arg3, %c0_i32 : i32, i32, i32, i32
  }
  func.func @transform_3(%arg0: i32, %arg1: i32, %arg2: i32, %arg3: i32) -> (i32, i32) {
    %c0_i32 = arith.constant 0 : i32
    %c0_i32_0 = arith.constant 0 : i32
    return %arg2, %c0_i32 : i32, i32
  }
  func.func @transform_4(%arg0: i32, %arg1: i32, %arg2: i32, %arg3: i32) -> (i32, i32) {
    %c0_i32 = arith.constant 0 : i32
    %c0_i32_0 = arith.constant 0 : i32
    return %arg2, %c0_i32 : i32, i32
  }
  func.func @transform_5(%arg0: i32, %arg1: i32, %arg2: i32, %arg3: i32) -> (i32, i32) {
    %c0_i32 = arith.constant 0 : i32
    %c0_i32_0 = arith.constant 0 : i32
    return %arg3, %c0_i32 : i32, i32
  }
  func.func @transform_6(%arg0: i32, %arg1: i32, %arg2: i32, %arg3: i32) -> (i32, i32) {
    %c0_i32 = arith.constant 0 : i32
    %c0_i32_0 = arith.constant 0 : i32
    return %arg3, %c0_i32 : i32, i32
  }
  func.func @transform_7(%arg0: i32, %arg1: i32, %arg2: i32, %arg3: i32) -> (i32, i32) {
    %c0_i32 = arith.constant 0 : i32
    %c0_i32_0 = arith.constant 0 : i32
    %c0_i32_1 = arith.constant 0 : i32
    return %c0_i32, %c0_i32_0 : i32, i32
  }
  func.func @transform_8(%arg0: i32, %arg1: i32, %arg2: i32, %arg3: i32) -> (i32, i32, i32, i32) {
    %c0_i32 = arith.constant 0 : i32
    %c0_i32_0 = arith.constant 0 : i32
    return %arg0, %arg1, %arg2, %c0_i32 : i32, i32, i32, i32
  }
}

</mosaic_0001>

<llo_original>
// kernel: rectified_attention_forward.3
$region0: #{rectified_attention_forward.3}
  #allocation0 [shape = 'u32[]', space=smem, size = 0x4, offset = 0x4, fixed_abs, tag = 'smem constant byte address 0x4 - core index']
  #allocation1 [shape = 'u32[144,128]{1,0:T(1,128)}', space=vmem, size = 0x12000, scoped, tag = 'internal scratch']
  #allocation2 [shape = 'f32[8,8]{1,0:T(8,128)}', space=vmem, size = 0x1000, scoped, tag = 'scratch operand']
  %s0 = inlined_call_operand.vmem [shape: f32[16,32], index: 0, kind: input, shape index: {}]
  %s1 = inlined_call_operand.vmem [shape: f32[96,32], index: 1, kind: input, shape index: {}]
  %s2 = inlined_call_operand.vmem [shape: f32[2,12,8,8], index: 2, kind: output, shape index: {}]
  %s3 = sld [smem:[#allocation0]]
  $region49: #{rectified_attention_forward.3} parent=0
    _
  %s5 = ssub.s32 1, %s3
  %s6 = scalar_select 0, %s5, %s3
  loop: start=0, step=1, limit=26
  $region2: #{rectified_attention_forward.3} parent=0 // loop_pre_header
    _
  $region3: #{rectified_attention_forward.3} parent=0 // loop_header
    %s8 = sphi 0, %s12
    %p9 = scmp.ge.s32.totalorder %s8, 26
    %s15 = sphi 0, %s41
    %s16 = sphi 0, %s37
    %s17 = sphi 0, %s33
    %s18 = sphi 0, %s29
    %s19 = sphi 0, %s15
    %s20 = sphi 0, %s16
    %s21 = sphi 0, %s17
    %s22 = sphi 0, %s18
    %s23 = sphi 0, %s19
    %s24 = sphi 0, %s20
    %s25 = sphi 0, %s21
    %s26 = sphi 0, %s22
    %s48 = sphi 0, %s50
    %s51 = sphi 0, %s48
    %s52 = sphi 0, %s51
    %s68 = sphi 0, %s52
    %s76 = sphi 0, %s78
    %s79 = sphi 0, %s76
    %s80 = sphi 0, %s79
    %s96 = sphi 0, %s80
    %s106 = sphi 0, %s108
    %s109 = sphi 0, %s106
    %s110 = sphi 0, %s109
    %s126 = sphi 0, %s110
  $region4: #{rectified_attention_forward.3} parent=0 // loop_header_branch
    %11 = sbr.rel (%p9) target = $region8
  $region5: #{rectified_attention_forward.3} parent=0 // loop_body
    %s13 = ssub.s32 %s8, 1
    %s14 = ssub.s32 %s8, 2
    %s27 = sadd.s32 1, %s18
    %p28 = scmp.ge.s32.totalorder %s27, 1
    %s29 = scalar_select %p28, 0, %s27
    %s30 = sadd.s32 1, %s17
    %s31 = scalar_select %p28, %s30, %s17
    %p32 = scmp.ge.s32.totalorder %s31, 12
    %s33 = scalar_select %p32, 0, %s31
    %s34 = sadd.s32 1, %s16
    %s35 = scalar_select %p32, %s34, %s16
    %p36 = scmp.ge.s32.totalorder %s35, 1
    %s37 = scalar_select %p36, 0, %s35
    %s38 = sadd.s32 1, %s15
    %s39 = scalar_select %p36, %s38, %s15
    %p40 = scmp.ge.s32.totalorder %s39, 2
    %s41 = scalar_select %p40, 0, %s39
    %s42 = sadd.s32 %s15, %s16
    %s43 = sadd.s32 %s41, %s37
    %s44 = ssub.s32 %s42, %s43
    %s45 = ssub.s32 %s18, %s29
    %s46 = sor.u32 %s44, %s45
    %p47 = scmp.eq.s32.totalorder %s46, 0
    %s49 = sadd.s32 %s48, 1
    %s50 = scalar_select %p47, %s48, %s49
    %p53 = pneg %p47
    %p54 = scmp.eq.s32.totalorder %s8, 23
    %p55 = por %p53, %p54
    %p56 = scmp.ne.s32.totalorder %s48, %s51
    %p57 = scmp.eq.s32.totalorder %s8, 0
    %p58 = por %p56, %p57
    %p59 = scmp.ne.s32.totalorder %s48, %s51
    %p60 = scmp.eq.s32.totalorder %s13, 23
    %p61 = por %p59, %p60
    %p62 = scmp.ne.s32.totalorder %s51, %s52
    %p63 = scmp.eq.s32.totalorder %s13, 0
    %p64 = por %p62, %p63
    %p65 = scmp.ne.s32.totalorder %s51, %s52
    %p66 = scmp.eq.s32.totalorder %s14, 23
    %p67 = por %p65, %p66
    %p69 = scmp.ne.s32.totalorder %s52, %s68
    %p70 = scmp.eq.s32.totalorder %s14, 0
    %p71 = por %p69, %p70
    %s72 = ssub.s32 %s17, %s33
    %s73 = ssub.s32 %s18, %s29
    %s74 = sor.u32 %s72, %s73
    %p75 = scmp.eq.s32.totalorder %s74, 0
    %s77 = sadd.s32 %s76, 1
    %s78 = scalar_select %p75, %s76, %s77
    %p81 = pneg %p75
    %p82 = scmp.eq.s32.totalorder %s8, 23
    %p83 = por %p81, %p82
    %p84 = scmp.ne.s32.totalorder %s76, %s79
    %p85 = scmp.eq.s32.totalorder %s8, 0
    %p86 = por %p84, %p85
    %p87 = scmp.ne.s32.totalorder %s76, %s79
    %p88 = scmp.eq.s32.totalorder %s13, 23
    %p89 = por %p87, %p88
    %p90 = scmp.ne.s32.totalorder %s79, %s80
    %p91 = scmp.eq.s32.totalorder %s13, 0
    %p92 = por %p90, %p91
    %p93 = scmp.ne.s32.totalorder %s79, %s80
    %p94 = scmp.eq.s32.totalorder %s14, 23
    %p95 = por %p93, %p94
    %p97 = scmp.ne.s32.totalorder %s80, %s96
    %p98 = scmp.eq.s32.totalorder %s14, 0
    %p99 = por %p97, %p98
    %s100 = ssub.s32 %s15, %s41
    %s101 = ssub.s32 %s17, %s33
    %s102 = sor.u32 %s100, %s101
    %s103 = ssub.s32 %s16, %s37
    %s104 = sor.u32 %s102, %s103
    %p105 = scmp.eq.s32.totalorder %s104, 0
    %s107 = sadd.s32 %s106, 1
    %s108 = scalar_select %p105, %s106, %s107
    %p111 = pneg %p105
    %p112 = scmp.eq.s32.totalorder %s8, 23
    %p113 = por %p111, %p112
    %p114 = scmp.ne.s32.totalorder %s106, %s109
    %p115 = scmp.eq.s32.totalorder %s8, 0
    %p116 = por %p114, %p115
    %p117 = scmp.ne.s32.totalorder %s106, %s109
    %p118 = scmp.eq.s32.totalorder %s13, 23
    %p119 = por %p117, %p118
    %p120 = scmp.ne.s32.totalorder %s109, %s110
    %p121 = scmp.eq.s32.totalorder %s13, 0
    %p122 = por %p120, %p121
    %p123 = scmp.ne.s32.totalorder %s109, %s110
    %p124 = scmp.eq.s32.totalorder %s14, 23
    %p125 = por %p123, %p124
    %p127 = scmp.ne.s32.totalorder %s110, %s126
    %p128 = scmp.eq.s32.totalorder %s14, 0
    %p129 = por %p127, %p128
    %p130 = scmp.le.s32.totalorder 1, %s8
    %p131 = scmp.lt.s32.totalorder %s8, 25
    %p132 = pnand %p130, %p131
    %p133 = pneg %p132
    // Predicated region
    $region9: #{rectified_attention_forward.3} parent=5 // pred_check
      _
    $region10: #{rectified_attention_forward.3} parent=5 // pred_check_branch
      %135 = sbr.rel (%p132) target = $region12
    $region11: #{rectified_attention_forward.3} parent=5 // pred_region
      %s136 = ssub.s32 %s8, 1
    $region12: #{rectified_attention_forward.3} parent=5 // pred_fallthru
      _
    %p137 = scmp.lt.s32.totalorder %s8, 24
    // Predicated region
    $region13: #{rectified_attention_forward.3} parent=5 // pred_check
      %p138 = pneg %p137
    $region14: #{rectified_attention_forward.3} parent=5 // pred_check_branch
      %140 = sbr.rel (%p138) target = $region16
    $region15: #{rectified_attention_forward.3} parent=5 // pred_region
      // Predicated region
      $region17: #{rectified_attention_forward.3} parent=15 // pred_check
        %p141 = pneg %p58
      $region18: #{rectified_attention_forward.3} parent=15 // pred_check_branch
        %143 = sbr.rel (%p141) target = $region20
      $region19: #{rectified_attention_forward.3} parent=15 // pred_region
        %s144 = sadd.s32 %s15, %s16
        %p145 = scmp.lt.s32.totalorder %s144, 1
        %s146 = scalar_select %p145, %s144, 1
        %p147 = scmp.lt.s32.totalorder %s18, 0
        %s148 = scalar_select %p147, %s18, 0
        %s149 = sadd.s32 %s148, %s146
        %s150 = smul.addr %s149, 8
        %s151 = scalar_lea.vmem %s0, %s150
        %s152 = sadd.s32 %s15, %s16
      $region20: #{rectified_attention_forward.3} parent=15 // pred_fallthru
        _
      // Predicated region
      $region21: #{rectified_attention_forward.3} parent=15 // pred_check
        %p153 = pneg %p86
      $region22: #{rectified_attention_forward.3} parent=15 // pred_check_branch
        %155 = sbr.rel (%p153) target = $region24
      $region23: #{rectified_attention_forward.3} parent=15 // pred_region
        %p156 = scmp.lt.s32.totalorder %s17, 11
        %s157 = scalar_select %p156, %s17, 11
        %p158 = scmp.lt.s32.totalorder %s18, 0
        %s159 = scalar_select %p158, %s18, 0
        %s160 = sadd.s32 %s159, %s157
        %s161 = smul.addr %s160, 8
        %s162 = scalar_lea.vmem %s1, %s161
      $region24: #{rectified_attention_forward.3} parent=15 // pred_fallthru
        _
    $region16: #{rectified_attention_forward.3} parent=5 // pred_fallthru
      _
    %p163 = scmp.le.s32.totalorder 1, %s8
    %p164 = scmp.lt.s32.totalorder %s8, 25
    %p165 = pnand %p163, %p164
    %p166 = pneg %p165
    // Predicated region
    $region25: #{rectified_attention_forward.3} parent=5 // pred_check
      _
    $region26: #{rectified_attention_forward.3} parent=5 // pred_check_branch
      %168 = sbr.rel (%p165) target = $region28
    $region27: #{rectified_attention_forward.3} parent=5 // pred_region
      %s169 = ssub.s32 %s8, 1
      %s170 = sadd.s32 %s19, %s20
      %p171 = scmp.lt.s32.totalorder %s170, 1
      %s172 = scalar_select %p171, %s170, 1
      %p173 = scmp.lt.s32.totalorder %s22, 0
      %s174 = scalar_select %p173, %s22, 0
      %s175 = sadd.s32 %s174, %s172
      %s176 = smul.addr %s175, 8
      %s177 = scalar_lea.vmem %s0, %s176
      %p178 = pneg %p64
      %p179 = pneg %p61
      %p180 = scmp.lt.s32.totalorder %s21, 11
      %s181 = scalar_select %p180, %s21, 11
      %p182 = scmp.lt.s32.totalorder %s22, 0
      %s183 = scalar_select %p182, %s22, 0
      %s184 = sadd.s32 %s183, %s181
      %s185 = smul.addr %s184, 8
      %s186 = scalar_lea.vmem %s1, %s185
      %p187 = pneg %p92
      %p188 = pneg %p89
      %p189 = pneg %p122
      %p190 = pneg %p119
      %p191 = scmp.lt.s32.totalorder %s19, 1
      %s192 = scalar_select %p191, %s19, 1
      %p193 = scmp.lt.s32.totalorder %s21, 11
      %s194 = scalar_select %p193, %s21, 11
      %p195 = scmp.lt.s32.totalorder %s20, 0
      %s196 = scalar_select %p195, %s20, 0
      %s197 = sadd.s32 %s196, %s194
      %s198 = smul.addr %s192, 12
      %s199 = sadd.s32 %s197, %s198
      %s200 = smul.addr %s199, 8
      %s201 = scalar_lea.vmem %s2, %s200
      %s202 = sadd.s32 %s19, %s20
      %p203 = scmp.lt.s32.totalorder %s202, 1
      %s204 = scalar_select %p203, %s202, 1
      %p205 = scmp.lt.s32.totalorder %s22, 0
      %s206 = scalar_select %p205, %s22, 0
      %s207 = sadd.s32 %s206, %s204
      %s208 = smul.addr %s207, 8
      %s209 = scalar_lea.vmem %s0, %s208
      %s210 = sadd.s32 %s19, %s20
      %p211 = scmp.lt.s32.totalorder %s21, 11
      %s212 = scalar_select %p211, %s21, 11
      %p213 = scmp.lt.s32.totalorder %s22, 0
      %s214 = scalar_select %p213, %s22, 0
      %s215 = sadd.s32 %s214, %s212
      %s216 = smul.addr %s215, 8
      %s217 = scalar_lea.vmem %s1, %s216
      %p218 = scmp.lt.s32.totalorder %s19, 1
      %s219 = scalar_select %p218, %s19, 1
      %p220 = scmp.lt.s32.totalorder %s21, 11
      %s221 = scalar_select %p220, %s21, 11
      %p222 = scmp.lt.s32.totalorder %s20, 0
      %s223 = scalar_select %p222, %s20, 0
      %s224 = sadd.s32 %s223, %s221
      %s225 = smul.addr %s219, 12
      %s226 = sadd.s32 %s224, %s225
      %s227 = smul.addr %s226, 8
      %s228 = scalar_lea.vmem %s2, %s227
      %p229 = scmp.eq.s32.totalorder %s22, 0
      // Predicated region
      $region29: #{rectified_attention_forward.3} parent=27 // pred_check
        %p230 = pneg %p229
      $region30: #{rectified_attention_forward.3} parent=27 // pred_check_branch
        %232 = sbr.rel (%p230) target = $region32
      $region31: #{rectified_attention_forward.3} parent=27 // pred_region
        %vm233 = vcmask 64512
        %234 = vst.msk [vmem:[#allocation2] sm:$0xff] %vm233, 0.0
      $region32: #{rectified_attention_forward.3} parent=27 // pred_fallthru
        _
      %v235 = vld [vmem:[#allocation2] sm:$0xff]
      %v236 = vld [vmem:[%s209] sm:$0xff]
      %v237 = vld [vmem:[%s217] sm:$0xff]
      %vm238 = vcmask 261120
      %v240 = vsel %vm238, %v236, 0
      %v243 = vsel %vm238, %v237, 0
      %245 = vmatprep.subr.mxu0 0.0
      %246 = vmatpush1.xpose.msra.mxu0 %v243
      %247 = vmatprep.subr.mxu0 0.0
      %248 = vmatpush1.xpose.msra.mxu0 0.0
      %249 = vmatprep.subr.mxu0 0.0
      %250 = vmatpush1.xpose.msra.mxu0 0.0
      %251 = vmatprep.subr.mxu0 0.0
      %252 = vmatpush1.xpose.msra.mxu0 0.0
      %253 = vmatprep.subr.mxu0 0.0
      %254 = vmatpush1.xpose.msra.mxu0 0.0
      %255 = vmatprep.subr.mxu0 0.0
      %256 = vmatpush1.xpose.msra.mxu0 0.0
      %257 = vmatprep.subr.mxu0 0.0
      %258 = vmatpush1.xpose.msra.mxu0 0.0
      %259 = vmatprep.subr.mxu0 0.0
      %260 = vmatpush1.xpose.msra.mxu0 0.0
      %261 = vmatprep.subr.mxu0 0.0
      %262 = vmatpush1.xpose.msra.mxu0 0.0
      %263 = vmatprep.subr.mxu0 0.0
      %264 = vmatpush1.xpose.msra.mxu0 0.0
      %265 = vmatprep.subr.mxu0 0.0
      %266 = vmatpush1.xpose.msra.mxu0 0.0
      %267 = vmatprep.subr.mxu0 0.0
      %268 = vmatpush1.xpose.msra.mxu0 0.0
      %269 = vmatprep.subr.mxu0 0.0
      %270 = vmatpush1.xpose.msra.mxu0 0.0
      %271 = vmatprep.subr.mxu0 0.0
      %272 = vmatpush1.xpose.msra.mxu0 0.0
      %273 = vmatprep.subr.mxu0 0.0
      %274 = vmatpush1.xpose.msra.mxu0 0.0
      %275 = vmatprep.subr.mxu0 0.0
      %276 = vmatpush1.xpose.msra.mxu0 0.0
      %277 = vmatprep.subr.mxu0 0.0
      %278 = vmatpush1.xpose.msra.mxu0 0.0
      %279 = vmatprep.subr.mxu0 0.0
      %280 = vmatpush1.xpose.msra.mxu0 0.0
      %281 = vmatprep.subr.mxu0 0.0
      %282 = vmatpush1.xpose.msra.mxu0 0.0
      %283 = vmatprep.subr.mxu0 0.0
      %284 = vmatpush1.xpose.msra.mxu0 0.0
      %285 = vmatprep.subr.mxu0 0.0
      %286 = vmatpush1.xpose.msra.mxu0 0.0
      %287 = vmatprep.subr.mxu0 0.0
      %288 = vmatpush1.xpose.msra.mxu0 0.0
      %289 = vmatprep.subr.mxu0 0.0
      %290 = vmatpush1.xpose.msra.mxu0 0.0
      %291 = vmatprep.subr.mxu0 0.0
      %292 = vmatpush1.xpose.msra.mxu0 0.0
      %293 = vmatprep.subr.mxu0 0.0
      %294 = vmatpush1.xpose.msra.mxu0 0.0
      %295 = vmatprep.subr.mxu0 0.0
      %296 = vmatpush1.xpose.msra.mxu0 0.0
      %297 = vmatprep.subr.mxu0 0.0
      %298 = vmatpush1.xpose.msra.mxu0 0.0
      %299 = vmatprep.subr.mxu0 0.0
      %300 = vmatpush1.xpose.msra.mxu0 0.0
      %301 = vmatprep.subr.mxu0 0.0
      %302 = vmatpush1.xpose.msra.mxu0 0.0
      %303 = vmatprep.subr.mxu0 0.0
      %304 = vmatpush1.xpose.msra.mxu0 0.0
      %305 = vmatprep.subr.mxu0 0.0
      %306 = vmatpush1.xpose.msra.mxu0 0.0
      %307 = vmatprep.subr.mxu0 0.0
      %308 = vmatpush1.xpose.msra.mxu0 0.0
      %309 = vmatprep.mubr.f32.mxu0 0.0
      %310 = vmatmul.mubr.f32.gmra.mrb[0].mxu0 %v240
      %v311 = vpop.f32.mrb[0].mxu0
      %v312 = vadd.f32 0.0, %v311
      %v313 = vpop.f32.mrb[0].mxu0
      %314 = vdwg.mxu0
      %v315 = vadd.f32 %v235, %v312
      %vm316 = vcmask 64512
      %317 = vst.msk [vmem:[#allocation2] sm:$0xff] %vm316, %v315
      // Predicated region
      $region33: #{rectified_attention_forward.3} parent=27 // pred_check
        %p318 = pneg %p229
      $region34: #{rectified_attention_forward.3} parent=27 // pred_check_branch
        %320 = sbr.rel (%p318) target = $region36
      $region35: #{rectified_attention_forward.3} parent=27 // pred_region
        %v321 = vld [vmem:[#allocation2] sm:$0xff]
        %322 = vst.msk [vmem:[%s228] sm:$0xff] %vm316, %v321
      $region36: #{rectified_attention_forward.3} parent=27 // pred_fallthru
        _
      %p323 = scmp.lt.s32.totalorder %s19, 1
      %s324 = scalar_select %p323, %s19, 1
      %p325 = scmp.lt.s32.totalorder %s21, 11
      %s326 = scalar_select %p325, %s21, 11
      %p327 = scmp.lt.s32.totalorder %s20, 0
      %s328 = scalar_select %p327, %s20, 0
      %s329 = sadd.s32 %s328, %s326
      %s330 = smul.addr %s324, 12
      %s331 = sadd.s32 %s329, %s330
      %s332 = smul.addr %s331, 8
      %s333 = scalar_lea.vmem %s2, %s332
      // Predicated region
      $region37: #{rectified_attention_forward.3} parent=27 // pred_check
        %p334 = pneg %p119
      $region38: #{rectified_attention_forward.3} parent=27 // pred_check_branch
        %336 = sbr.rel (%p334) target = $region40
      $region39: #{rectified_attention_forward.3} parent=27 // pred_region
        _
      $region40: #{rectified_attention_forward.3} parent=27 // pred_fallthru
        _
    $region28: #{rectified_attention_forward.3} parent=5 // pred_fallthru
      _
    %p337 = scmp.le.s32.totalorder 2, %s8
    // Predicated region
    $region41: #{rectified_attention_forward.3} parent=5 // pred_check
      %p338 = pneg %p337
    $region42: #{rectified_attention_forward.3} parent=5 // pred_check_branch
      %340 = sbr.rel (%p338) target = $region44
    $region43: #{rectified_attention_forward.3} parent=5 // pred_region
      %s341 = ssub.s32 %s8, 2
      // Predicated region
      $region45: #{rectified_attention_forward.3} parent=43 // pred_check
        %p342 = pneg %p125
      $region46: #{rectified_attention_forward.3} parent=43 // pred_check_branch
        %344 = sbr.rel (%p342) target = $region48
      $region47: #{rectified_attention_forward.3} parent=43 // pred_region
        %p345 = scmp.lt.s32.totalorder %s23, 1
        %s346 = scalar_select %p345, %s23, 1
        %p347 = scmp.lt.s32.totalorder %s25, 11
        %s348 = scalar_select %p347, %s25, 11
        %p349 = scmp.lt.s32.totalorder %s24, 0
        %s350 = scalar_select %p349, %s24, 0
        %s351 = sadd.s32 %s350, %s348
        %s352 = smul.addr %s346, 12
        %s353 = sadd.s32 %s351, %s352
        %s354 = smul.addr %s353, 8
        %s355 = scalar_lea.vmem %s2, %s354
      $region48: #{rectified_attention_forward.3} parent=43 // pred_fallthru
        _
    $region44: #{rectified_attention_forward.3} parent=5 // pred_fallthru
      _
  $region6: #{rectified_attention_forward.3} parent=0 // loop_footer
    %s12 = sadd.s32 1, %s8
  $region7: #{rectified_attention_forward.3} parent=0 // loop_footer_branch
    %7 = sbr.rel target = $region3
  $region8: #{rectified_attention_forward.3} parent=0 // loop_exit
    _

// kernel: rectified_attention_forward.5
$region0: #{rectified_attention_forward.5}
  #allocation0 [shape = 'u32[]', space=smem, size = 0x4, offset = 0x4, fixed_abs, tag = 'smem constant byte address 0x4 - core index']
  #allocation1 [shape = 'u32[144,128]{1,0:T(1,128)}', space=vmem, size = 0x12000, scoped, tag = 'internal scratch']
  #allocation2 [shape = 'f32[8,32]{1,0:T(8,128)}', space=vmem, size = 0x1000, scoped, tag = 'scratch operand']
  %s0 = inlined_call_operand.vmem [shape: f32[2,4,8,8], index: 0, kind: input, shape index: {}]
  %s1 = inlined_call_operand.vmem [shape: f32[4,8,32], index: 1, kind: input, shape index: {}]
  %s2 = inlined_call_operand.hbm [shape: f32[2,8,32], index: 2, kind: output, shape index: {}]
  %s3 = sld [smem:[#allocation0]]
  $region49: #{rectified_attention_forward.5} parent=0
    _
  %s5 = ssub.s32 1, %s3
  %s6 = scalar_select 0, %s5, %s3
  $region1: #{rectified_attention_forward.5} parent=0
    #allocation3 [shape = 'u8[8192]{0}', space=vmem, size = 0x2000, scoped, tag = 'output window, operand 0']
    #allocation4 [shape = 's32[2]{0}', space=sflag, size = 0x8, scoped, tag = 'scoped memory for rectified_attention_forward.5']
    %7 = vsyncpa [#allocation4], 0
    %s8 = scalar_lea.sflag [#allocation4], 1
    %9 = vsyncpa %s8, 0
    loop: start=0, step=1, limit=10
    $region2: #{rectified_attention_forward.5} parent=1 // loop_pre_header
      _
    $region3: #{rectified_attention_forward.5} parent=1 // loop_header
      %s11 = sphi 0, %s15
      %p12 = scmp.ge.s32.totalorder %s11, 10
      %s18 = sphi 0, %s44
      %s19 = sphi 0, %s40
      %s20 = sphi 0, %s36
      %s21 = sphi 0, %s32
      %s22 = sphi 0, %s18
      %s23 = sphi 0, %s19
      %s24 = sphi 0, %s20
      %s25 = sphi 0, %s21
      %s26 = sphi 0, %s22
      %s27 = sphi 0, %s23
      %s28 = sphi 0, %s24
      %s29 = sphi 0, %s25
      %s51 = sphi 0, %s53
      %s54 = sphi 0, %s51
      %s55 = sphi 0, %s54
      %s71 = sphi 0, %s55
      %s79 = sphi 0, %s81
      %s82 = sphi 0, %s79
      %s83 = sphi 0, %s82
      %s99 = sphi 0, %s83
      %s109 = sphi 0, %s111
      %s112 = sphi 0, %s109
      %s113 = sphi 0, %s112
      %s129 = sphi 0, %s113
    $region4: #{rectified_attention_forward.5} parent=1 // loop_header_branch
      %14 = sbr.rel (%p12) target = $region8
    $region5: #{rectified_attention_forward.5} parent=1 // loop_body
      %s16 = ssub.s32 %s11, 1
      %s17 = ssub.s32 %s11, 2
      %s30 = sadd.s32 1, %s21
      %p31 = scmp.ge.s32.totalorder %s30, 4
      %s32 = scalar_select %p31, 0, %s30
      %s33 = sadd.s32 1, %s20
      %s34 = scalar_select %p31, %s33, %s20
      %p35 = scmp.ge.s32.totalorder %s34, 1
      %s36 = scalar_select %p35, 0, %s34
      %s37 = sadd.s32 1, %s19
      %s38 = scalar_select %p35, %s37, %s19
      %p39 = scmp.ge.s32.totalorder %s38, 1
      %s40 = scalar_select %p39, 0, %s38
      %s41 = sadd.s32 1, %s18
      %s42 = scalar_select %p39, %s41, %s18
      %p43 = scmp.ge.s32.totalorder %s42, 2
      %s44 = scalar_select %p43, 0, %s42
      %s45 = ssub.s32 %s18, %s44
      %s46 = ssub.s32 %s21, %s32
      %s47 = sor.u32 %s45, %s46
      %s48 = ssub.s32 %s19, %s40
      %s49 = sor.u32 %s47, %s48
      %p50 = scmp.eq.s32.totalorder %s49, 0
      %s52 = sadd.s32 %s51, 1
      %s53 = scalar_select %p50, %s51, %s52
      %p56 = pneg %p50
      %p57 = scmp.eq.s32.totalorder %s11, 7
      %p58 = por %p56, %p57
      %p59 = scmp.ne.s32.totalorder %s51, %s54
      %p60 = scmp.eq.s32.totalorder %s11, 0
      %p61 = por %p59, %p60
      %p62 = scmp.ne.s32.totalorder %s51, %s54
      %p63 = scmp.eq.s32.totalorder %s16, 7
      %p64 = por %p62, %p63
      %p65 = scmp.ne.s32.totalorder %s54, %s55
      %p66 = scmp.eq.s32.totalorder %s16, 0
      %p67 = por %p65, %p66
      %p68 = scmp.ne.s32.totalorder %s54, %s55
      %p69 = scmp.eq.s32.totalorder %s17, 7
      %p70 = por %p68, %p69
      %p72 = scmp.ne.s32.totalorder %s55, %s71
      %p73 = scmp.eq.s32.totalorder %s17, 0
      %p74 = por %p72, %p73
      %s75 = ssub.s32 %s21, %s32
      %s76 = ssub.s32 %s20, %s36
      %s77 = sor.u32 %s75, %s76
      %p78 = scmp.eq.s32.totalorder %s77, 0
      %s80 = sadd.s32 %s79, 1
      %s81 = scalar_select %p78, %s79, %s80
      %p84 = pneg %p78
      %p85 = scmp.eq.s32.totalorder %s11, 7
      %p86 = por %p84, %p85
      %p87 = scmp.ne.s32.totalorder %s79, %s82
      %p88 = scmp.eq.s32.totalorder %s11, 0
      %p89 = por %p87, %p88
      %p90 = scmp.ne.s32.totalorder %s79, %s82
      %p91 = scmp.eq.s32.totalorder %s16, 7
      %p92 = por %p90, %p91
      %p93 = scmp.ne.s32.totalorder %s82, %s83
      %p94 = scmp.eq.s32.totalorder %s16, 0
      %p95 = por %p93, %p94
      %p96 = scmp.ne.s32.totalorder %s82, %s83
      %p97 = scmp.eq.s32.totalorder %s17, 7
      %p98 = por %p96, %p97
      %p100 = scmp.ne.s32.totalorder %s83, %s99
      %p101 = scmp.eq.s32.totalorder %s17, 0
      %p102 = por %p100, %p101
      %s103 = ssub.s32 %s18, %s44
      %s104 = ssub.s32 %s19, %s40
      %s105 = sor.u32 %s103, %s104
      %s106 = ssub.s32 %s20, %s36
      %s107 = sor.u32 %s105, %s106
      %p108 = scmp.eq.s32.totalorder %s107, 0
      %s110 = sadd.s32 %s109, 1
      %s111 = scalar_select %p108, %s109, %s110
      %p114 = pneg %p108
      %p115 = scmp.eq.s32.totalorder %s11, 7
      %p116 = por %p114, %p115
      %p117 = scmp.ne.s32.totalorder %s109, %s112
      %p118 = scmp.eq.s32.totalorder %s11, 0
      %p119 = por %p117, %p118
      %p120 = scmp.ne.s32.totalorder %s109, %s112
      %p121 = scmp.eq.s32.totalorder %s16, 7
      %p122 = por %p120, %p121
      %p123 = scmp.ne.s32.totalorder %s112, %s113
      %p124 = scmp.eq.s32.totalorder %s16, 0
      %p125 = por %p123, %p124
      %p126 = scmp.ne.s32.totalorder %s112, %s113
      %p127 = scmp.eq.s32.totalorder %s17, 7
      %p128 = por %p126, %p127
      %p130 = scmp.ne.s32.totalorder %s113, %s129
      %p131 = scmp.eq.s32.totalorder %s17, 0
      %p132 = por %p130, %p131
      %p133 = scmp.le.s32.totalorder 1, %s11
      %p134 = scmp.lt.s32.totalorder %s11, 9
      %p135 = pnand %p133, %p134
      %p136 = pneg %p135
      // Predicated region
      $region9: #{rectified_attention_forward.5} parent=5 // pred_check
        _
      $region10: #{rectified_attention_forward.5} parent=5 // pred_check_branch
        %138 = sbr.rel (%p135) target = $region12
      $region11: #{rectified_attention_forward.5} parent=5 // pred_region
        %s139 = ssub.s32 %s11, 1
      $region12: #{rectified_attention_forward.5} parent=5 // pred_fallthru
        _
      %p140 = scmp.lt.s32.totalorder %s11, 8
      // Predicated region
      $region13: #{rectified_attention_forward.5} parent=5 // pred_check
        %p141 = pneg %p140
      $region14: #{rectified_attention_forward.5} parent=5 // pred_check_branch
        %143 = sbr.rel (%p141) target = $region16
      $region15: #{rectified_attention_forward.5} parent=5 // pred_region
        // Predicated region
        $region17: #{rectified_attention_forward.5} parent=15 // pred_check
          %p144 = pneg %p61
        $region18: #{rectified_attention_forward.5} parent=15 // pred_check_branch
          %146 = sbr.rel (%p144) target = $region20
        $region19: #{rectified_attention_forward.5} parent=15 // pred_region
          %p147 = scmp.lt.s32.totalorder %s18, 1
          %s148 = scalar_select %p147, %s18, 1
          %p149 = scmp.lt.s32.totalorder %s21, 3
          %s150 = scalar_select %p149, %s21, 3
          %p151 = scmp.lt.s32.totalorder %s19, 0
          %s152 = scalar_select %p151, %s19, 0
          %s153 = sadd.s32 %s152, %s150
          %s154 = smul.addr %s148, 4
          %s155 = sadd.s32 %s153, %s154
          %s156 = smul.addr %s155, 8
          %s157 = scalar_lea.vmem %s0, %s156
        $region20: #{rectified_attention_forward.5} parent=15 // pred_fallthru
          _
        // Predicated region
        $region21: #{rectified_attention_forward.5} parent=15 // pred_check
          %p158 = pneg %p89
        $region22: #{rectified_attention_forward.5} parent=15 // pred_check_branch
          %160 = sbr.rel (%p158) target = $region24
        $region23: #{rectified_attention_forward.5} parent=15 // pred_region
          %p161 = scmp.lt.s32.totalorder %s21, 3
          %s162 = scalar_select %p161, %s21, 3
          %p163 = scmp.lt.s32.totalorder %s20, 0
          %s164 = scalar_select %p163, %s20, 0
          %s165 = sadd.s32 %s164, %s162
          %s166 = smul.addr %s165, 8
          %s167 = scalar_lea.vmem %s1, %s166
        $region24: #{rectified_attention_forward.5} parent=15 // pred_fallthru
          _
      $region16: #{rectified_attention_forward.5} parent=5 // pred_fallthru
        _
      %p168 = scmp.le.s32.totalorder 1, %s11
      %p169 = scmp.lt.s32.totalorder %s11, 9
      %p170 = pnand %p168, %p169
      %p171 = pneg %p170
      // Predicated region
      $region25: #{rectified_attention_forward.5} parent=5 // pred_check
        _
      $region26: #{rectified_attention_forward.5} parent=5 // pred_check_branch
        %173 = sbr.rel (%p170) target = $region28
      $region27: #{rectified_attention_forward.5} parent=5 // pred_region
        %s174 = ssub.s32 %s11, 1
        %p175 = scmp.lt.s32.totalorder %s22, 1
        %s176 = scalar_select %p175, %s22, 1
        %p177 = scmp.lt.s32.totalorder %s25, 3
        %s178 = scalar_select %p177, %s25, 3
        %p179 = scmp.lt.s32.totalorder %s23, 0
        %s180 = scalar_select %p179, %s23, 0
        %s181 = sadd.s32 %s180, %s178
        %s182 = smul.addr %s176, 4
        %s183 = sadd.s32 %s181, %s182
        %s184 = smul.addr %s183, 8
        %s185 = scalar_lea.vmem %s0, %s184
        %p186 = pneg %p67
        %p187 = pneg %p64
        %p188 = scmp.lt.s32.totalorder %s25, 3
        %s189 = scalar_select %p188, %s25, 3
        %p190 = scmp.lt.s32.totalorder %s24, 0
        %s191 = scalar_select %p190, %s24, 0
        %s192 = sadd.s32 %s191, %s189
        %s193 = smul.addr %s192, 8
        %s194 = scalar_lea.vmem %s1, %s193
        %p195 = pneg %p95
        %p196 = pneg %p92
        %p197 = pneg %p125
        %p198 = pneg %p122
        %s199 = sand.u32 %s112, 1
        %s200 = scalar_lea.sflag [#allocation4], %s199
        %s201 = sand.u32 %s112, 1
        %s202 = smul.addr %s201, 8
        %s203 = scalar_lea.vmem [#allocation3], %s202
        %p204 = scmp.lt.s32.totalorder %s22, 1
        %s205 = scalar_select %p204, %s22, 1
        %p206 = scmp.lt.s32.totalorder %s25, 3
        %s207 = scalar_select %p206, %s25, 3
        %p208 = scmp.lt.s32.totalorder %s23, 0
        %s209 = scalar_select %p208, %s23, 0
        %s210 = sadd.s32 %s209, %s207
        %s211 = smul.addr %s205, 4
        %s212 = sadd.s32 %s210, %s211
        %s213 = smul.addr %s212, 8
        %s214 = scalar_lea.vmem %s0, %s213
        %p215 = scmp.lt.s32.totalorder %s25, 3
        %s216 = scalar_select %p215, %s25, 3
        %p217 = scmp.lt.s32.totalorder %s24, 0
        %s218 = scalar_select %p217, %s24, 0
        %s219 = sadd.s32 %s218, %s216
        %s220 = smul.addr %s219, 8
        %s221 = scalar_lea.vmem %s1, %s220
        %p222 = scmp.eq.s32.totalorder %s25, 0
        // Predicated region
        $region29: #{rectified_attention_forward.5} parent=27 // pred_check
          %p223 = pneg %p222
        $region30: #{rectified_attention_forward.5} parent=27 // pred_check_branch
          %225 = sbr.rel (%p223) target = $region32
        $region31: #{rectified_attention_forward.5} parent=27 // pred_region
          %vm226 = vcmask 261120
          %227 = vst.msk [vmem:[#allocation2] sm:$0xff] %vm226, 0.0
        $region32: #{rectified_attention_forward.5} parent=27 // pred_fallthru
          _
        %v228 = vld [vmem:[#allocation2] sm:$0xff]
        %v229 = vld [vmem:[%s214] sm:$0xff]
        %v230 = vld [vmem:[%s221] sm:$0xff]
        %vm231 = vcmask 64512
        %v233 = vsel %vm231, %v229, 0
        %235 = vmatprep.subr.mxu0 0.0
        %236 = vmatpush1.msra.mxu0 %v230
        %237 = vmatprep.subr.mxu0 0.0
        %238 = vmatpush1.msra.mxu0 0.0
        %239 = vmatprep.subr.mxu0 0.0
        %240 = vmatpush1.msra.mxu0 0.0
        %241 = vmatprep.subr.mxu0 0.0
        %242 = vmatpush1.msra.mxu0 0.0
        %243 = vmatprep.subr.mxu0 0.0
        %244 = vmatpush1.msra.mxu0 0.0
        %245 = vmatprep.subr.mxu0 0.0
        %246 = vmatpush1.msra.mxu0 0.0
        %247 = vmatprep.subr.mxu0 0.0
        %248 = vmatpush1.msra.mxu0 0.0
        %249 = vmatprep.subr.mxu0 0.0
        %250 = vmatpush1.msra.mxu0 0.0
        %251 = vmatprep.subr.mxu0 0.0
        %252 = vmatpush1.msra.mxu0 0.0
        %253 = vmatprep.subr.mxu0 0.0
        %254 = vmatpush1.msra.mxu0 0.0
        %255 = vmatprep.subr.mxu0 0.0
        %256 = vmatpush1.msra.mxu0 0.0
        %257 = vmatprep.subr.mxu0 0.0
        %258 = vmatpush1.msra.mxu0 0.0
        %259 = vmatprep.subr.mxu0 0.0
        %260 = vmatpush1.msra.mxu0 0.0
        %261 = vmatprep.subr.mxu0 0.0
        %262 = vmatpush1.msra.mxu0 0.0
        %263 = vmatprep.subr.mxu0 0.0
        %264 = vmatpush1.msra.mxu0 0.0
        %265 = vmatprep.subr.mxu0 0.0
        %266 = vmatpush1.msra.mxu0 0.0
        %267 = vmatprep.subr.mxu0 0.0
        %268 = vmatpush1.msra.mxu0 0.0
        %269 = vmatprep.subr.mxu0 0.0
        %270 = vmatpush1.msra.mxu0 0.0
        %271 = vmatprep.subr.mxu0 0.0
        %272 = vmatpush1.msra.mxu0 0.0
        %273 = vmatprep.subr.mxu0 0.0
        %274 = vmatpush1.msra.mxu0 0.0
        %275 = vmatprep.subr.mxu0 0.0
        %276 = vmatpush1.msra.mxu0 0.0
        %277 = vmatprep.subr.mxu0 0.0
        %278 = vmatpush1.msra.mxu0 0.0
        %279 = vmatprep.subr.mxu0 0.0
        %280 = vmatpush1.msra.mxu0 0.0
        %281 = vmatprep.subr.mxu0 0.0
        %282 = vmatpush1.msra.mxu0 0.0
        %283 = vmatprep.subr.mxu0 0.0
        %284 = vmatpush1.msra.mxu0 0.0
        %285 = vmatprep.subr.mxu0 0.0
        %286 = vmatpush1.msra.mxu0 0.0
        %287 = vmatprep.subr.mxu0 0.0
        %288 = vmatpush1.msra.mxu0 0.0
        %289 = vmatprep.subr.mxu0 0.0
        %290 = vmatpush1.msra.mxu0 0.0
        %291 = vmatprep.subr.mxu0 0.0
        %292 = vmatpush1.msra.mxu0 0.0
        %293 = vmatprep.subr.mxu0 0.0
        %294 = vmatpush1.msra.mxu0 0.0
        %295 = vmatprep.subr.mxu0 0.0
        %296 = vmatpush1.msra.mxu0 0.0
        %297 = vmatprep.subr.mxu0 0.0
        %298 = vmatpush1.msra.mxu0 0.0
        %299 = vmatprep.mubr.f32.mxu0 0.0
        %300 = vmatmul.mubr.f32.gmra.mrb[0].mxu0 %v233
        %v301 = vpop.f32.mrb[0].mxu0
        %v302 = vadd.f32 0.0, %v301
        %v303 = vpop.f32.mrb[0].mxu0
        %304 = vdwg.mxu0
        %v305 = vadd.f32 %v228, %v302
        %vm306 = vcmask 261120
        %307 = vst.msk [vmem:[#allocation2] sm:$0xff] %vm306, %v305
        %p308 = scmp.eq.s32.totalorder %s25, 3
        // Predicated region
        $region33: #{rectified_attention_forward.5} parent=27 // pred_check
          %p309 = pneg %p308
        $region34: #{rectified_attention_forward.5} parent=27 // pred_check_branch
          %311 = sbr.rel (%p309) target = $region36
        $region35: #{rectified_attention_forward.5} parent=27 // pred_region
          %v312 = vld [vmem:[#allocation2] sm:$0xff]
          %313 = vst.msk [vmem:[%s203] sm:$0xff] %vm306, %v312
        $region36: #{rectified_attention_forward.5} parent=27 // pred_fallthru
          _
        %s314 = sand.u32 %s112, 1
        %s315 = scalar_lea.sflag [#allocation4], %s314
        %s316 = sand.u32 %s112, 1
        %s317 = smul.addr %s316, 8
        %s318 = scalar_lea.vmem [#allocation3], %s317
        // Predicated region
        $region37: #{rectified_attention_forward.5} parent=27 // pred_check
          %p319 = pneg %p122
        $region38: #{rectified_attention_forward.5} parent=27 // pred_check_branch
          %321 = sbr.rel (%p319) target = $region40
        $region39: #{rectified_attention_forward.5} parent=27 // pred_region
          %s323 = ssub.s32 128, 128
          %324 = vsyncadd %s315, %s323
          %s325 = sadd.s32 %s24, %s23
          %s326 = sadd.s32 %s325, %s22
          %s327 = smul.addr %s326, 128
          %s328 = scalar_lea.hbm %s2, %s327
          %s330 = sshll.u32 %s318, 4
          %s331 = int_to_ptr.vmem [resolvable:$true] %s330
          %333 = dma.vmem_to_hbm [thread:$0]  %s331, 128, %s328, %s315
        $region40: #{rectified_attention_forward.5} parent=27 // pred_fallthru
          _
      $region28: #{rectified_attention_forward.5} parent=5 // pred_fallthru
        _
      %p334 = scmp.le.s32.totalorder 2, %s11
      // Predicated region
      $region41: #{rectified_attention_forward.5} parent=5 // pred_check
        %p335 = pneg %p334
      $region42: #{rectified_attention_forward.5} parent=5 // pred_check_branch
        %337 = sbr.rel (%p335) target = $region44
      $region43: #{rectified_attention_forward.5} parent=5 // pred_region
        %s338 = ssub.s32 %s11, 2
        // Predicated region
        $region45: #{rectified_attention_forward.5} parent=43 // pred_check
          %p339 = pneg %p128
        $region46: #{rectified_attention_forward.5} parent=43 // pred_check_branch
          %341 = sbr.rel (%p339) target = $region48
        $region47: #{rectified_attention_forward.5} parent=43 // pred_region
          %s342 = sand.u32 %s113, 1
          %s343 = scalar_lea.sflag [#allocation4], %s342
          %s344 = sand.u32 %s113, 1
          %s345 = smul.addr %s344, 8
          %s346 = scalar_lea.vmem [#allocation3], %s345
          %347 = dma.done %s343, 128
        $region48: #{rectified_attention_forward.5} parent=43 // pred_fallthru
          _
      $region44: #{rectified_attention_forward.5} parent=5 // pred_fallthru
        _
    $region6: #{rectified_attention_forward.5} parent=1 // loop_footer
      %s15 = sadd.s32 1, %s11
    $region7: #{rectified_attention_forward.5} parent=1 // loop_footer_branch
      %10 = sbr.rel target = $region3
    $region8: #{rectified_attention_forward.5} parent=1 // loop_exit
      _
    %348 = vsyncpa [#allocation4], 1
    %s349 = scalar_lea.sflag [#allocation4], 1
    %350 = vsyncpa %s349, 1

// kernel: rectified_attention_forward.4
$region0: #{rectified_attention_forward.4}
  #allocation0 [shape = 'u32[]', space=smem, size = 0x4, offset = 0x4, fixed_abs, tag = 'smem constant byte address 0x4 - core index']
  #allocation1 [shape = 'u32[144,128]{1,0:T(1,128)}', space=vmem, size = 0x12000, scoped, tag = 'internal scratch']
  #allocation2 [shape = 'f32[8,1]{1,0:T(8,128)}', space=vmem, size = 0x1000, scoped, tag = 'scratch operand']
  #allocation3 [shape = 'f32[8,1]{1,0:T(8,128)}', space=vmem, size = 0x1000, scoped, tag = 'scratch operand']
  #allocation4 [shape = 'f32[8,8]{1,0:T(8,128)}', space=vmem, size = 0x1000, scoped, tag = 'scratch operand']
  %s0 = inlined_call_operand.vmem [shape: f32[2,12,8,8], index: 0, kind: input, shape index: {}, may-alias: {0,1,2}]
  %s1 = inlined_call_operand.vmem [shape: f32[2,12,8,8], index: 1, kind: input, shape index: {}, may-alias: {0,1,2}]
  %s2 = inlined_call_operand.vmem [shape: f32[2,12,8,8], index: 2, kind: input, shape index: {}, may-alias: {0,1,2}]
  %s3 = inlined_call_operand.vmem [shape: f32[8,8], index: 3, kind: input, shape index: {}]
  %s4 = inlined_call_operand.vmem [shape: f32[8,8], index: 4, kind: input, shape index: {}]
  %s5 = inlined_call_operand.vmem [shape: f32[8,8], index: 5, kind: input, shape index: {}]
  %s6 = inlined_call_operand.vmem [shape: f32[8,8], index: 6, kind: input, shape index: {}]
  %s7 = inlined_call_operand.vmem [shape: f32[8,8], index: 7, kind: input, shape index: {}]
  %s8 = inlined_call_operand.vmem [shape: f32[2,4,8,8], index: 8, kind: output, shape index: {}]
  %s9 = sld [smem:[#allocation0]]
  $region77: #{rectified_attention_forward.4} parent=0
    _
  %s11 = ssub.s32 1, %s9
  %s12 = scalar_select 0, %s11, %s9
  loop: start=0, step=1, limit=10
  $region2: #{rectified_attention_forward.4} parent=0 // loop_pre_header
    _
  $region3: #{rectified_attention_forward.4} parent=0 // loop_header
    %s14 = sphi 0, %s18
    %p15 = scmp.ge.s32.totalorder %s14, 10
    %s21 = sphi 0, %s47
    %s22 = sphi 0, %s43
    %s23 = sphi 0, %s39
    %s24 = sphi 0, %s35
    %s25 = sphi 0, %s21
    %s26 = sphi 0, %s22
    %s27 = sphi 0, %s23
    %s28 = sphi 0, %s24
    %s29 = sphi 0, %s25
    %s30 = sphi 0, %s26
    %s31 = sphi 0, %s27
    %s32 = sphi 0, %s28
    %s54 = sphi 0, %s56
    %s57 = sphi 0, %s54
    %s58 = sphi 0, %s57
    %s74 = sphi 0, %s58
    %s86 = sphi 0, %s88
    %s89 = sphi 0, %s86
    %s90 = sphi 0, %s89
    %s106 = sphi 0, %s90
    %s118 = sphi 0, %s120
    %s121 = sphi 0, %s118
    %s122 = sphi 0, %s121
    %s138 = sphi 0, %s122
    %s144 = sphi 0, %s146
    %s147 = sphi 0, %s144
    %s148 = sphi 0, %s147
    %s164 = sphi 0, %s148
    %s170 = sphi 0, %s172
    %s173 = sphi 0, %s170
    %s174 = sphi 0, %s173
    %s190 = sphi 0, %s174
    %s196 = sphi 0, %s198
    %s199 = sphi 0, %s196
    %s200 = sphi 0, %s199
    %s216 = sphi 0, %s200
    %s222 = sphi 0, %s224
    %s225 = sphi 0, %s222
    %s226 = sphi 0, %s225
    %s242 = sphi 0, %s226
    %s246 = sphi 0, %s246
    %s248 = sphi 0, %s246
    %s249 = sphi 0, %s248
    %s263 = sphi 0, %s249
    %s273 = sphi 0, %s275
    %s276 = sphi 0, %s273
    %s277 = sphi 0, %s276
    %s293 = sphi 0, %s277
  $region4: #{rectified_attention_forward.4} parent=0 // loop_header_branch
    %17 = sbr.rel (%p15) target = $region8
  $region5: #{rectified_attention_forward.4} parent=0 // loop_body
    %s19 = ssub.s32 %s14, 1
    %s20 = ssub.s32 %s14, 2
    %s33 = sadd.s32 1, %s24
    %p34 = scmp.ge.s32.totalorder %s33, 1
    %s35 = scalar_select %p34, 0, %s33
    %s36 = sadd.s32 1, %s23
    %s37 = scalar_select %p34, %s36, %s23
    %p38 = scmp.ge.s32.totalorder %s37, 1
    %s39 = scalar_select %p38, 0, %s37
    %s40 = sadd.s32 1, %s22
    %s41 = scalar_select %p38, %s40, %s22
    %p42 = scmp.ge.s32.totalorder %s41, 4
    %s43 = scalar_select %p42, 0, %s41
    %s44 = sadd.s32 1, %s21
    %s45 = scalar_select %p42, %s44, %s21
    %p46 = scmp.ge.s32.totalorder %s45, 2
    %s47 = scalar_select %p46, 0, %s45
    %s48 = ssub.s32 %s21, %s47
    %s49 = ssub.s32 %s22, %s43
    %s50 = sor.u32 %s48, %s49
    %s51 = ssub.s32 %s23, %s39
    %s52 = sor.u32 %s50, %s51
    %p53 = scmp.eq.s32.totalorder %s52, 0
    %s55 = sadd.s32 %s54, 1
    %s56 = scalar_select %p53, %s54, %s55
    %p59 = pneg %p53
    %p60 = scmp.eq.s32.totalorder %s14, 7
    %p61 = por %p59, %p60
    %p62 = scmp.ne.s32.totalorder %s54, %s57
    %p63 = scmp.eq.s32.totalorder %s14, 0
    %p64 = por %p62, %p63
    %p65 = scmp.ne.s32.totalorder %s54, %s57
    %p66 = scmp.eq.s32.totalorder %s19, 7
    %p67 = por %p65, %p66
    %p68 = scmp.ne.s32.totalorder %s57, %s58
    %p69 = scmp.eq.s32.totalorder %s19, 0
    %p70 = por %p68, %p69
    %p71 = scmp.ne.s32.totalorder %s57, %s58
    %p72 = scmp.eq.s32.totalorder %s20, 7
    %p73 = por %p71, %p72
    %p75 = scmp.ne.s32.totalorder %s58, %s74
    %p76 = scmp.eq.s32.totalorder %s20, 0
    %p77 = por %p75, %p76
    %s78 = sadd.s32 %s22, 4
    %s79 = sadd.s32 %s43, 4
    %s80 = ssub.s32 %s21, %s47
    %s81 = ssub.s32 %s78, %s79
    %s82 = sor.u32 %s80, %s81
    %s83 = ssub.s32 %s24, %s35
    %s84 = sor.u32 %s82, %s83
    %p85 = scmp.eq.s32.totalorder %s84, 0
    %s87 = sadd.s32 %s86, 1
    %s88 = scalar_select %p85, %s86, %s87
    %p91 = pneg %p85
    %p92 = scmp.eq.s32.totalorder %s14, 7
    %p93 = por %p91, %p92
    %p94 = scmp.ne.s32.totalorder %s86, %s89
    %p95 = scmp.eq.s32.totalorder %s14, 0
    %p96 = por %p94, %p95
    %p97 = scmp.ne.s32.totalorder %s86, %s89
    %p98 = scmp.eq.s32.totalorder %s19, 7
    %p99 = por %p97, %p98
    %p100 = scmp.ne.s32.totalorder %s89, %s90
    %p101 = scmp.eq.s32.totalorder %s19, 0
    %p102 = por %p100, %p101
    %p103 = scmp.ne.s32.totalorder %s89, %s90
    %p104 = scmp.eq.s32.totalorder %s20, 7
    %p105 = por %p103, %p104
    %p107 = scmp.ne.s32.totalorder %s90, %s106
    %p108 = scmp.eq.s32.totalorder %s20, 0
    %p109 = por %p107, %p108
    %s110 = sadd.s32 %s22, 8
    %s111 = sadd.s32 %s43, 8
    %s112 = ssub.s32 %s21, %s47
    %s113 = ssub.s32 %s110, %s111
    %s114 = sor.u32 %s112, %s113
    %s115 = ssub.s32 %s24, %s35
    %s116 = sor.u32 %s114, %s115
    %p117 = scmp.eq.s32.totalorder %s116, 0
    %s119 = sadd.s32 %s118, 1
    %s120 = scalar_select %p117, %s118, %s119
    %p123 = pneg %p117
    %p124 = scmp.eq.s32.totalorder %s14, 7
    %p125 = por %p123, %p124
    %p126 = scmp.ne.s32.totalorder %s118, %s121
    %p127 = scmp.eq.s32.totalorder %s14, 0
    %p128 = por %p126, %p127
    %p129 = scmp.ne.s32.totalorder %s118, %s121
    %p130 = scmp.eq.s32.totalorder %s19, 7
    %p131 = por %p129, %p130
    %p132 = scmp.ne.s32.totalorder %s121, %s122
    %p133 = scmp.eq.s32.totalorder %s19, 0
    %p134 = por %p132, %p133
    %p135 = scmp.ne.s32.totalorder %s121, %s122
    %p136 = scmp.eq.s32.totalorder %s20, 7
    %p137 = por %p135, %p136
    %p139 = scmp.ne.s32.totalorder %s122, %s138
    %p140 = scmp.eq.s32.totalorder %s20, 0
    %p141 = por %p139, %p140
    %s142 = ssub.s32 %s23, %s39
    %p143 = scmp.eq.s32.totalorder %s142, 0
    %s145 = sadd.s32 %s144, 1
    %s146 = scalar_select %p143, %s144, %s145
    %p149 = pneg %p143
    %p150 = scmp.eq.s32.totalorder %s14, 7
    %p151 = por %p149, %p150
    %p152 = scmp.ne.s32.totalorder %s144, %s147
    %p153 = scmp.eq.s32.totalorder %s14, 0
    %p154 = por %p152, %p153
    %p155 = scmp.ne.s32.totalorder %s144, %s147
    %p156 = scmp.eq.s32.totalorder %s19, 7
    %p157 = por %p155, %p156
    %p158 = scmp.ne.s32.totalorder %s147, %s148
    %p159 = scmp.eq.s32.totalorder %s19, 0
    %p160 = por %p158, %p159
    %p161 = scmp.ne.s32.totalorder %s147, %s148
    %p162 = scmp.eq.s32.totalorder %s20, 7
    %p163 = por %p161, %p162
    %p165 = scmp.ne.s32.totalorder %s148, %s164
    %p166 = scmp.eq.s32.totalorder %s20, 0
    %p167 = por %p165, %p166
    %s168 = ssub.s32 %s23, %s39
    %p169 = scmp.eq.s32.totalorder %s168, 0
    %s171 = sadd.s32 %s170, 1
    %s172 = scalar_select %p169, %s170, %s171
    %p175 = pneg %p169
    %p176 = scmp.eq.s32.totalorder %s14, 7
    %p177 = por %p175, %p176
    %p178 = scmp.ne.s32.totalorder %s170, %s173
    %p179 = scmp.eq.s32.totalorder %s14, 0
    %p180 = por %p178, %p179
    %p181 = scmp.ne.s32.totalorder %s170, %s173
    %p182 = scmp.eq.s32.totalorder %s19, 7
    %p183 = por %p181, %p182
    %p184 = scmp.ne.s32.totalorder %s173, %s174
    %p185 = scmp.eq.s32.totalorder %s19, 0
    %p186 = por %p184, %p185
    %p187 = scmp.ne.s32.totalorder %s173, %s174
    %p188 = scmp.eq.s32.totalorder %s20, 7
    %p189 = por %p187, %p188
    %p191 = scmp.ne.s32.totalorder %s174, %s190
    %p192 = scmp.eq.s32.totalorder %s20, 0
    %p193 = por %p191, %p192
    %s194 = ssub.s32 %s24, %s35
    %p195 = scmp.eq.s32.totalorder %s194, 0
    %s197 = sadd.s32 %s196, 1
    %s198 = scalar_select %p195, %s196, %s197
    %p201 = pneg %p195
    %p202 = scmp.eq.s32.totalorder %s14, 7
    %p203 = por %p201, %p202
    %p204 = scmp.ne.s32.totalorder %s196, %s199
    %p205 = scmp.eq.s32.totalorder %s14, 0
    %p206 = por %p204, %p205
    %p207 = scmp.ne.s32.totalorder %s196, %s199
    %p208 = scmp.eq.s32.totalorder %s19, 7
    %p209 = por %p207, %p208
    %p210 = scmp.ne.s32.totalorder %s199, %s200
    %p211 = scmp.eq.s32.totalorder %s19, 0
    %p212 = por %p210, %p211
    %p213 = scmp.ne.s32.totalorder %s199, %s200
    %p214 = scmp.eq.s32.totalorder %s20, 7
    %p215 = por %p213, %p214
    %p217 = scmp.ne.s32.totalorder %s200, %s216
    %p218 = scmp.eq.s32.totalorder %s20, 0
    %p219 = por %p217, %p218
    %s220 = ssub.s32 %s24, %s35
    %p221 = scmp.eq.s32.totalorder %s220, 0
    %s223 = sadd.s32 %s222, 1
    %s224 = scalar_select %p221, %s222, %s223
    %p227 = pneg %p221
    %p228 = scmp.eq.s32.totalorder %s14, 7
    %p229 = por %p227, %p228
    %p230 = scmp.ne.s32.totalorder %s222, %s225
    %p231 = scmp.eq.s32.totalorder %s14, 0
    %p232 = por %p230, %p231
    %p233 = scmp.ne.s32.totalorder %s222, %s225
    %p234 = scmp.eq.s32.totalorder %s19, 7
    %p235 = por %p233, %p234
    %p236 = scmp.ne.s32.totalorder %s225, %s226
    %p237 = scmp.eq.s32.totalorder %s19, 0
    %p238 = por %p236, %p237
    %p239 = scmp.ne.s32.totalorder %s225, %s226
    %p240 = scmp.eq.s32.totalorder %s20, 7
    %p241 = por %p239, %p240
    %p243 = scmp.ne.s32.totalorder %s226, %s242
    %p244 = scmp.eq.s32.totalorder %s20, 0
    %p245 = por %p243, %p244
    %s247 = sadd.s32 %s246, 1
    %p250 = scmp.eq.s32.totalorder %s14, 7
    %p251 = scmp.ne.s32.totalorder %s246, %s248
    %p252 = scmp.eq.s32.totalorder %s14, 0
    %p253 = por %p251, %p252
    %p254 = scmp.ne.s32.totalorder %s246, %s248
    %p255 = scmp.eq.s32.totalorder %s19, 7
    %p256 = por %p254, %p255
    %p257 = scmp.ne.s32.totalorder %s248, %s249
    %p258 = scmp.eq.s32.totalorder %s19, 0
    %p259 = por %p257, %p258
    %p260 = scmp.ne.s32.totalorder %s248, %s249
    %p261 = scmp.eq.s32.totalorder %s20, 7
    %p262 = por %p260, %p261
    %p264 = scmp.ne.s32.totalorder %s249, %s263
    %p265 = scmp.eq.s32.totalorder %s20, 0
    %p266 = por %p264, %p265
    %s267 = ssub.s32 %s21, %s47
    %s268 = ssub.s32 %s22, %s43
    %s269 = sor.u32 %s267, %s268
    %s270 = ssub.s32 %s23, %s39
    %s271 = sor.u32 %s269, %s270
    %p272 = scmp.eq.s32.totalorder %s271, 0
    %s274 = sadd.s32 %s273, 1
    %s275 = scalar_select %p272, %s273, %s274
    %p278 = pneg %p272
    %p279 = scmp.eq.s32.totalorder %s14, 7
    %p280 = por %p278, %p279
    %p281 = scmp.ne.s32.totalorder %s273, %s276
    %p282 = scmp.eq.s32.totalorder %s14, 0
    %p283 = por %p281, %p282
    %p284 = scmp.ne.s32.totalorder %s273, %s276
    %p285 = scmp.eq.s32.totalorder %s19, 7
    %p286 = por %p284, %p285
    %p287 = scmp.ne.s32.totalorder %s276, %s277
    %p288 = scmp.eq.s32.totalorder %s19, 0
    %p289 = por %p287, %p288
    %p290 = scmp.ne.s32.totalorder %s276, %s277
    %p291 = scmp.eq.s32.totalorder %s20, 7
    %p292 = por %p290, %p291
    %p294 = scmp.ne.s32.totalorder %s277, %s293
    %p295 = scmp.eq.s32.totalorder %s20, 0
    %p296 = por %p294, %p295
    %p297 = scmp.le.s32.totalorder 1, %s14
    %p298 = scmp.lt.s32.totalorder %s14, 9
    %p299 = pnand %p297, %p298
    %p300 = pneg %p299
    // Predicated region
    $region9: #{rectified_attention_forward.4} parent=5 // pred_check
      _
    $region10: #{rectified_attention_forward.4} parent=5 // pred_check_branch
      %302 = sbr.rel (%p299) target = $region12
    $region11: #{rectified_attention_forward.4} parent=5 // pred_region
      %s303 = ssub.s32 %s14, 1
      // Predicated region
      $region13: #{rectified_attention_forward.4} parent=11 // pred_check
        %p304 = pneg %p160
      $region14: #{rectified_attention_forward.4} parent=11 // pred_check_branch
        %306 = sbr.rel (%p304) target = $region16
      $region15: #{rectified_attention_forward.4} parent=11 // pred_region
        %p307 = scmp.lt.s32.totalorder %s27, 0
        %s308 = scalar_select %p307, %s27, 0
        %s309 = smul.addr %s308, 8
        %s310 = scalar_lea.vmem %s3, %s309
      $region16: #{rectified_attention_forward.4} parent=11 // pred_fallthru
        _
      // Predicated region
      $region17: #{rectified_attention_forward.4} parent=11 // pred_check
        %p311 = pneg %p186
      $region18: #{rectified_attention_forward.4} parent=11 // pred_check_branch
        %313 = sbr.rel (%p311) target = $region20
      $region19: #{rectified_attention_forward.4} parent=11 // pred_region
        %p314 = scmp.lt.s32.totalorder %s27, 0
        %s315 = scalar_select %p314, %s27, 0
        %s316 = smul.addr %s315, 8
        %s317 = scalar_lea.vmem %s4, %s316
      $region20: #{rectified_attention_forward.4} parent=11 // pred_fallthru
        _
      // Predicated region
      $region21: #{rectified_attention_forward.4} parent=11 // pred_check
        %p318 = pneg %p212
      $region22: #{rectified_attention_forward.4} parent=11 // pred_check_branch
        %320 = sbr.rel (%p318) target = $region24
      $region23: #{rectified_attention_forward.4} parent=11 // pred_region
        %p321 = scmp.lt.s32.totalorder %s28, 0
        %s322 = scalar_select %p321, %s28, 0
        %s323 = smul.addr %s322, 8
        %s324 = scalar_lea.vmem %s5, %s323
      $region24: #{rectified_attention_forward.4} parent=11 // pred_fallthru
        _
      // Predicated region
      $region25: #{rectified_attention_forward.4} parent=11 // pred_check
        %p325 = pneg %p238
      $region26: #{rectified_attention_forward.4} parent=11 // pred_check_branch
        %327 = sbr.rel (%p325) target = $region28
      $region27: #{rectified_attention_forward.4} parent=11 // pred_region
        %p328 = scmp.lt.s32.totalorder %s28, 0
        %s329 = scalar_select %p328, %s28, 0
        %s330 = smul.addr %s329, 8
        %s331 = scalar_lea.vmem %s6, %s330
      $region28: #{rectified_attention_forward.4} parent=11 // pred_fallthru
        _
      // Predicated region
      $region29: #{rectified_attention_forward.4} parent=11 // pred_check
        %p332 = pneg %p259
      $region30: #{rectified_attention_forward.4} parent=11 // pred_check_branch
        %334 = sbr.rel (%p332) target = $region32
      $region31: #{rectified_attention_forward.4} parent=11 // pred_region
        _
      $region32: #{rectified_attention_forward.4} parent=11 // pred_fallthru
        _
    $region12: #{rectified_attention_forward.4} parent=5 // pred_fallthru
      _
    %p335 = scmp.lt.s32.totalorder %s14, 8
    // Predicated region
    $region33: #{rectified_attention_forward.4} parent=5 // pred_check
      %p336 = pneg %p335
    $region34: #{rectified_attention_forward.4} parent=5 // pred_check_branch
      %338 = sbr.rel (%p336) target = $region36
    $region35: #{rectified_attention_forward.4} parent=5 // pred_region
      // Predicated region
      $region37: #{rectified_attention_forward.4} parent=35 // pred_check
        %p339 = pneg %p64
      $region38: #{rectified_attention_forward.4} parent=35 // pred_check_branch
        %341 = sbr.rel (%p339) target = $region40
      $region39: #{rectified_attention_forward.4} parent=35 // pred_region
        %p342 = scmp.lt.s32.totalorder %s21, 1
        %s343 = scalar_select %p342, %s21, 1
        %p344 = scmp.lt.s32.totalorder %s22, 11
        %s345 = scalar_select %p344, %s22, 11
        %p346 = scmp.lt.s32.totalorder %s23, 0
        %s347 = scalar_select %p346, %s23, 0
        %s348 = sadd.s32 %s347, %s345
        %s349 = smul.addr %s343, 12
        %s350 = sadd.s32 %s348, %s349
        %s351 = smul.addr %s350, 8
        %s352 = scalar_lea.vmem %s0, %s351
      $region40: #{rectified_attention_forward.4} parent=35 // pred_fallthru
        _
      // Predicated region
      $region41: #{rectified_attention_forward.4} parent=35 // pred_check
        %p353 = pneg %p96
      $region42: #{rectified_attention_forward.4} parent=35 // pred_check_branch
        %355 = sbr.rel (%p353) target = $region44
      $region43: #{rectified_attention_forward.4} parent=35 // pred_region
        %s356 = sadd.s32 %s22, 4
        %p357 = scmp.lt.s32.totalorder %s21, 1
        %s358 = scalar_select %p357, %s21, 1
        %p359 = scmp.lt.s32.totalorder %s356, 11
        %s360 = scalar_select %p359, %s356, 11
        %p361 = scmp.lt.s32.totalorder %s24, 0
        %s362 = scalar_select %p361, %s24, 0
        %s363 = sadd.s32 %s362, %s360
        %s364 = smul.addr %s358, 12
        %s365 = sadd.s32 %s363, %s364
        %s366 = smul.addr %s365, 8
        %s367 = scalar_lea.vmem %s1, %s366
        %s368 = sadd.s32 %s22, 4
      $region44: #{rectified_attention_forward.4} parent=35 // pred_fallthru
        _
      // Predicated region
      $region45: #{rectified_attention_forward.4} parent=35 // pred_check
        %p369 = pneg %p128
      $region46: #{rectified_attention_forward.4} parent=35 // pred_check_branch
        %371 = sbr.rel (%p369) target = $region48
      $region47: #{rectified_attention_forward.4} parent=35 // pred_region
        %s372 = sadd.s32 %s22, 8
        %p373 = scmp.lt.s32.totalorder %s21, 1
        %s374 = scalar_select %p373, %s21, 1
        %p375 = scmp.lt.s32.totalorder %s372, 11
        %s376 = scalar_select %p375, %s372, 11
        %p377 = scmp.lt.s32.totalorder %s24, 0
        %s378 = scalar_select %p377, %s24, 0
        %s379 = sadd.s32 %s378, %s376
        %s380 = smul.addr %s374, 12
        %s381 = sadd.s32 %s379, %s380
        %s382 = smul.addr %s381, 8
        %s383 = scalar_lea.vmem %s2, %s382
        %s384 = sadd.s32 %s22, 8
      $region48: #{rectified_attention_forward.4} parent=35 // pred_fallthru
        _
    $region36: #{rectified_attention_forward.4} parent=5 // pred_fallthru
      _
    %p385 = scmp.le.s32.totalorder 1, %s14
    %p386 = scmp.lt.s32.totalorder %s14, 9
    %p387 = pnand %p385, %p386
    %p388 = pneg %p387
    // Predicated region
    $region49: #{rectified_attention_forward.4} parent=5 // pred_check
      _
    $region50: #{rectified_attention_forward.4} parent=5 // pred_check_branch
      %390 = sbr.rel (%p387) target = $region52
    $region51: #{rectified_attention_forward.4} parent=5 // pred_region
      %s391 = ssub.s32 %s14, 1
      %p392 = scmp.lt.s32.totalorder %s25, 1
      %s393 = scalar_select %p392, %s25, 1
      %p394 = scmp.lt.s32.totalorder %s26, 11
      %s395 = scalar_select %p394, %s26, 11
      %p396 = scmp.lt.s32.totalorder %s27, 0
      %s397 = scalar_select %p396, %s27, 0
      %s398 = sadd.s32 %s397, %s395
      %s399 = smul.addr %s393, 12
      %s400 = sadd.s32 %s398, %s399
      %s401 = smul.addr %s400, 8
      %s402 = scalar_lea.vmem %s0, %s401
      %p403 = pneg %p70
      %p404 = pneg %p67
      %s405 = sadd.s32 %s26, 4
      %p406 = scmp.lt.s32.totalorder %s25, 1
      %s407 = scalar_select %p406, %s25, 1
      %p408 = scmp.lt.s32.totalorder %s405, 11
      %s409 = scalar_select %p408, %s405, 11
      %p410 = scmp.lt.s32.totalorder %s28, 0
      %s411 = scalar_select %p410, %s28, 0
      %s412 = sadd.s32 %s411, %s409
      %s413 = smul.addr %s407, 12
      %s414 = sadd.s32 %s412, %s413
      %s415 = smul.addr %s414, 8
      %s416 = scalar_lea.vmem %s1, %s415
      %p417 = pneg %p102
      %p418 = pneg %p99
      %s419 = sadd.s32 %s26, 8
      %p420 = scmp.lt.s32.totalorder %s25, 1
      %s421 = scalar_select %p420, %s25, 1
      %p422 = scmp.lt.s32.totalorder %s419, 11
      %s423 = scalar_select %p422, %s419, 11
      %p424 = scmp.lt.s32.totalorder %s28, 0
      %s425 = scalar_select %p424, %s28, 0
      %s426 = sadd.s32 %s425, %s423
      %s427 = smul.addr %s421, 12
      %s428 = sadd.s32 %s426, %s427
      %s429 = smul.addr %s428, 8
      %s430 = scalar_lea.vmem %s2, %s429
      %p431 = pneg %p134
      %p432 = pneg %p131
      %p433 = scmp.lt.s32.totalorder %s27, 0
      %s434 = scalar_select %p433, %s27, 0
      %s435 = smul.addr %s434, 8
      %s436 = scalar_lea.vmem %s3, %s435
      %p437 = pneg %p160
      %p438 = pneg %p157
      %p439 = scmp.lt.s32.totalorder %s27, 0
      %s440 = scalar_select %p439, %s27, 0
      %s441 = smul.addr %s440, 8
      %s442 = scalar_lea.vmem %s4, %s441
      %p443 = pneg %p186
      %p444 = pneg %p183
      %p445 = scmp.lt.s32.totalorder %s28, 0
      %s446 = scalar_select %p445, %s28, 0
      %s447 = smul.addr %s446, 8
      %s448 = scalar_lea.vmem %s5, %s447
      %p449 = pneg %p212
      %p450 = pneg %p209
      %p451 = scmp.lt.s32.totalorder %s28, 0
      %s452 = scalar_select %p451, %s28, 0
      %s453 = smul.addr %s452, 8
      %s454 = scalar_lea.vmem %s6, %s453
      %p455 = pneg %p238
      %p456 = pneg %p235
      %p457 = pneg %p259
      %p458 = pneg %p256
      %p459 = pneg %p289
      %p460 = pneg %p286
      %p461 = scmp.lt.s32.totalorder %s25, 1
      %s462 = scalar_select %p461, %s25, 1
      %p463 = scmp.lt.s32.totalorder %s26, 3
      %s464 = scalar_select %p463, %s26, 3
      %p465 = scmp.lt.s32.totalorder %s27, 0
      %s466 = scalar_select %p465, %s27, 0
      %s467 = sadd.s32 %s466, %s464
      %s468 = smul.addr %s462, 4
      %s469 = sadd.s32 %s467, %s468
      %s470 = smul.addr %s469, 8
      %s471 = scalar_lea.vmem %s8, %s470
      %p472 = scmp.lt.s32.totalorder %s25, 1
      %s473 = scalar_select %p472, %s25, 1
      %p474 = scmp.lt.s32.totalorder %s26, 11
      %s475 = scalar_select %p474, %s26, 11
      %p476 = scmp.lt.s32.totalorder %s27, 0
      %s477 = scalar_select %p476, %s27, 0
      %s478 = sadd.s32 %s477, %s475
      %s479 = smul.addr %s473, 12
      %s480 = sadd.s32 %s478, %s479
      %s481 = smul.addr %s480, 8
      %s482 = scalar_lea.vmem %s0, %s481
      %s483 = sadd.s32 %s26, 4
      %p484 = scmp.lt.s32.totalorder %s25, 1
      %s485 = scalar_select %p484, %s25, 1
      %p486 = scmp.lt.s32.totalorder %s483, 11
      %s487 = scalar_select %p486, %s483, 11
      %p488 = scmp.lt.s32.totalorder %s28, 0
      %s489 = scalar_select %p488, %s28, 0
      %s490 = sadd.s32 %s489, %s487
      %s491 = smul.addr %s485, 12
      %s492 = sadd.s32 %s490, %s491
      %s493 = smul.addr %s492, 8
      %s494 = scalar_lea.vmem %s1, %s493
      %s495 = sadd.s32 %s26, 4
      %s496 = sadd.s32 %s26, 8
      %p497 = scmp.lt.s32.totalorder %s25, 1
      %s498 = scalar_select %p497, %s25, 1
      %p499 = scmp.lt.s32.totalorder %s496, 11
      %s500 = scalar_select %p499, %s496, 11
      %p501 = scmp.lt.s32.totalorder %s28, 0
      %s502 = scalar_select %p501, %s28, 0
      %s503 = sadd.s32 %s502, %s500
      %s504 = smul.addr %s498, 12
      %s505 = sadd.s32 %s503, %s504
      %s506 = smul.addr %s505, 8
      %s507 = scalar_lea.vmem %s2, %s506
      %s508 = sadd.s32 %s26, 8
      %p509 = scmp.lt.s32.totalorder %s27, 0
      %s510 = scalar_select %p509, %s27, 0
      %s511 = smul.addr %s510, 8
      %s512 = scalar_lea.vmem %s3, %s511
      %p513 = scmp.lt.s32.totalorder %s27, 0
      %s514 = scalar_select %p513, %s27, 0
      %s515 = smul.addr %s514, 8
      %s516 = scalar_lea.vmem %s4, %s515
      %p517 = scmp.lt.s32.totalorder %s28, 0
      %s518 = scalar_select %p517, %s28, 0
      %s519 = smul.addr %s518, 8
      %s520 = scalar_lea.vmem %s5, %s519
      %p521 = scmp.lt.s32.totalorder %s28, 0
      %s522 = scalar_select %p521, %s28, 0
      %s523 = smul.addr %s522, 8
      %s524 = scalar_lea.vmem %s6, %s523
      %p525 = scmp.lt.s32.totalorder %s25, 1
      %s526 = scalar_select %p525, %s25, 1
      %p527 = scmp.lt.s32.totalorder %s26, 3
      %s528 = scalar_select %p527, %s26, 3
      %p529 = scmp.lt.s32.totalorder %s27, 0
      %s530 = scalar_select %p529, %s27, 0
      %s531 = sadd.s32 %s530, %s528
      %s532 = smul.addr %s526, 4
      %s533 = sadd.s32 %s531, %s532
      %s534 = smul.addr %s533, 8
      %s535 = scalar_lea.vmem %s8, %s534
      %p536 = scmp.eq.s32.totalorder %s28, 0
      // Predicated region
      $region53: #{rectified_attention_forward.4} parent=51 // pred_check
        %p537 = pneg %p536
      $region54: #{rectified_attention_forward.4} parent=51 // pred_check_branch
        %539 = sbr.rel (%p537) target = $region56
      $region55: #{rectified_attention_forward.4} parent=51 // pred_region
        %vm540 = vcmask 7168
        %541 = vst.msk [vmem:[#allocation2] sm:$0xff] %vm540, -inf
        %542 = vst.msk [vmem:[#allocation3] sm:$0xff] %vm540, 0.0
        %vm543 = vcmask 64512
        %544 = vst.msk [vmem:[#allocation4] sm:$0xff] %vm543, 0.0
      $region56: #{rectified_attention_forward.4} parent=51 // pred_fallthru
        _
      %s545 = smul.u32 %s28, 8
      %s546 = sadd.s32 %s27, 1
      %s547 = smul.u32 %s546, 8
      %p548 = scmp.lt.s32.totalorder %s545, %s547
      // Predicated region
      $region57: #{rectified_attention_forward.4} parent=51 // pred_check
        %p549 = pneg %p548
      $region58: #{rectified_attention_forward.4} parent=51 // pred_check_branch
        %551 = sbr.rel (%p549) target = $region60
      $region59: #{rectified_attention_forward.4} parent=51 // pred_region
        %v552 = vld [vmem:[%s7] sm:$0xff]
        %v553 = vld [vmem:[%s482] sm:$0xff]
        %v554 = vld [vmem:[%s494] sm:$0xff]
        %v555 = vld [vmem:[%s512] sm:$0xff]
        %v556 = vmul.f32 %v553, %v555
        %vm557 = vcmask 64512
        %v559 = vsel %vm557, %v553, 0
        %561 = vmatprep.subr.mxu0 0.0
        %562 = vmatpush1.msra.mxu0 %v552
        %563 = vmatprep.subr.mxu0 0.0
        %564 = vmatpush1.msra.mxu0 0.0
        %565 = vmatprep.subr.mxu0 0.0
        %566 = vmatpush1.msra.mxu0 0.0
        %567 = vmatprep.subr.mxu0 0.0
        %568 = vmatpush1.msra.mxu0 0.0
        %569 = vmatprep.subr.mxu0 0.0
        %570 = vmatpush1.msra.mxu0 0.0
        %571 = vmatprep.subr.mxu0 0.0
        %572 = vmatpush1.msra.mxu0 0.0
        %573 = vmatprep.subr.mxu0 0.0
        %574 = vmatpush1.msra.mxu0 0.0
        %575 = vmatprep.subr.mxu0 0.0
        %576 = vmatpush1.msra.mxu0 0.0
        %577 = vmatprep.subr.mxu0 0.0
        %578 = vmatpush1.msra.mxu0 0.0
        %579 = vmatprep.subr.mxu0 0.0
        %580 = vmatpush1.msra.mxu0 0.0
        %581 = vmatprep.subr.mxu0 0.0
        %582 = vmatpush1.msra.mxu0 0.0
        %583 = vmatprep.subr.mxu0 0.0
        %584 = vmatpush1.msra.mxu0 0.0
        %585 = vmatprep.subr.mxu0 0.0
        %586 = vmatpush1.msra.mxu0 0.0
        %587 = vmatprep.subr.mxu0 0.0
        %588 = vmatpush1.msra.mxu0 0.0
        %589 = vmatprep.subr.mxu0 0.0
        %590 = vmatpush1.msra.mxu0 0.0
        %591 = vmatprep.subr.mxu0 0.0
        %592 = vmatpush1.msra.mxu0 0.0
        %593 = vmatprep.subr.mxu0 0.0
        %594 = vmatpush1.msra.mxu0 0.0
        %595 = vmatprep.subr.mxu0 0.0
        %596 = vmatpush1.msra.mxu0 0.0
        %597 = vmatprep.subr.mxu0 0.0
        %598 = vmatpush1.msra.mxu0 0.0
        %599 = vmatprep.subr.mxu0 0.0
        %600 = vmatpush1.msra.mxu0 0.0
        %601 = vmatprep.subr.mxu0 0.0
        %602 = vmatpush1.msra.mxu0 0.0
        %603 = vmatprep.subr.mxu0 0.0
        %604 = vmatpush1.msra.mxu0 0.0
        %605 = vmatprep.subr.mxu0 0.0
        %606 = vmatpush1.msra.mxu0 0.0
        %607 = vmatprep.subr.mxu0 0.0
        %608 = vmatpush1.msra.mxu0 0.0
        %609 = vmatprep.subr.mxu0 0.0
        %610 = vmatpush1.msra.mxu0 0.0
        %611 = vmatprep.subr.mxu0 0.0
        %612 = vmatpush1.msra.mxu0 0.0
        %613 = vmatprep.subr.mxu0 0.0
        %614 = vmatpush1.msra.mxu0 0.0
        %615 = vmatprep.subr.mxu0 0.0
        %616 = vmatpush1.msra.mxu0 0.0
        %617 = vmatprep.subr.mxu0 0.0
        %618 = vmatpush1.msra.mxu0 0.0
        %619 = vmatprep.subr.mxu0 0.0
        %620 = vmatpush1.msra.mxu0 0.0
        %621 = vmatprep.subr.mxu0 0.0
        %622 = vmatpush1.msra.mxu0 0.0
        %623 = vmatprep.subr.mxu0 0.0
        %624 = vmatpush1.msra.mxu0 0.0
        %625 = vmatprep.mubr.f32.mxu0 0.0
        %626 = vmatmul.mubr.f32.gmra.mrb[0].mxu0 %v559
        %v627 = vpop.f32.mrb[0].mxu0
        %v628 = vadd.f32 0.0, %v627
        %v629 = vpop.f32.mrb[0].mxu0
        %630 = vdwg.mxu0
        %v631 = vld [vmem:[%s516] sm:$0xff]
        %v632 = vmul.f32 %v628, %v631
        %v633 = vadd.f32 %v556, %v632
        %v634 = vld [vmem:[%s520] sm:$0xff]
        %v635 = vmul.f32 %v554, %v634
        %v637 = vsel %vm557, %v554, 0
        %639 = vmatprep.subr.mxu0 0.0
        %640 = vmatpush1.msra.mxu0 %v552
        %641 = vmatprep.subr.mxu0 0.0
        %642 = vmatpush1.msra.mxu0 0.0
        %643 = vmatprep.subr.mxu0 0.0
        %644 = vmatpush1.msra.mxu0 0.0
        %645 = vmatprep.subr.mxu0 0.0
        %646 = vmatpush1.msra.mxu0 0.0
        %647 = vmatprep.subr.mxu0 0.0
        %648 = vmatpush1.msra.mxu0 0.0
        %649 = vmatprep.subr.mxu0 0.0
        %650 = vmatpush1.msra.mxu0 0.0
        %651 = vmatprep.subr.mxu0 0.0
        %652 = vmatpush1.msra.mxu0 0.0
        %653 = vmatprep.subr.mxu0 0.0
        %654 = vmatpush1.msra.mxu0 0.0
        %655 = vmatprep.subr.mxu0 0.0
        %656 = vmatpush1.msra.mxu0 0.0
        %657 = vmatprep.subr.mxu0 0.0
        %658 = vmatpush1.msra.mxu0 0.0
        %659 = vmatprep.subr.mxu0 0.0
        %660 = vmatpush1.msra.mxu0 0.0
        %661 = vmatprep.subr.mxu0 0.0
        %662 = vmatpush1.msra.mxu0 0.0
        %663 = vmatprep.subr.mxu0 0.0
        %664 = vmatpush1.msra.mxu0 0.0
        %665 = vmatprep.subr.mxu0 0.0
        %666 = vmatpush1.msra.mxu0 0.0
        %667 = vmatprep.subr.mxu0 0.0
        %668 = vmatpush1.msra.mxu0 0.0
        %669 = vmatprep.subr.mxu0 0.0
        %670 = vmatpush1.msra.mxu0 0.0
        %671 = vmatprep.subr.mxu0 0.0
        %672 = vmatpush1.msra.mxu0 0.0
        %673 = vmatprep.subr.mxu0 0.0
        %674 = vmatpush1.msra.mxu0 0.0
        %675 = vmatprep.subr.mxu0 0.0
        %676 = vmatpush1.msra.mxu0 0.0
        %677 = vmatprep.subr.mxu0 0.0
        %678 = vmatpush1.msra.mxu0 0.0
        %679 = vmatprep.subr.mxu0 0.0
        %680 = vmatpush1.msra.mxu0 0.0
        %681 = vmatprep.subr.mxu0 0.0
        %682 = vmatpush1.msra.mxu0 0.0
        %683 = vmatprep.subr.mxu0 0.0
        %684 = vmatpush1.msra.mxu0 0.0
        %685 = vmatprep.subr.mxu0 0.0
        %686 = vmatpush1.msra.mxu0 0.0
        %687 = vmatprep.subr.mxu0 0.0
        %688 = vmatpush1.msra.mxu0 0.0
        %689 = vmatprep.subr.mxu0 0.0
        %690 = vmatpush1.msra.mxu0 0.0
        %691 = vmatprep.subr.mxu0 0.0
        %692 = vmatpush1.msra.mxu0 0.0
        %693 = vmatprep.subr.mxu0 0.0
        %694 = vmatpush1.msra.mxu0 0.0
        %695 = vmatprep.subr.mxu0 0.0
        %696 = vmatpush1.msra.mxu0 0.0
        %697 = vmatprep.subr.mxu0 0.0
        %698 = vmatpush1.msra.mxu0 0.0
        %699 = vmatprep.subr.mxu0 0.0
        %700 = vmatpush1.msra.mxu0 0.0
        %701 = vmatprep.subr.mxu0 0.0
        %702 = vmatpush1.msra.mxu0 0.0
        %703 = vmatprep.mubr.f32.mxu0 0.0
        %704 = vmatmul.mubr.f32.gmra.mrb[0].mxu0 %v637
        %v705 = vpop.f32.mrb[0].mxu0
        %v706 = vadd.f32 0.0, %v705
        %v707 = vpop.f32.mrb[0].mxu0
        %708 = vdwg.mxu0
        %v709 = vld [vmem:[%s524] sm:$0xff]
        %v710 = vmul.f32 %v706, %v709
        %v711 = vadd.f32 %v635, %v710
        %v713 = vsel %vm557, %v633, 0
        %v716 = vsel %vm557, %v711, 0
        %718 = vmatprep.subr.mxu0 0.0
        %719 = vmatpush1.xpose.msra.mxu0 %v716
        %720 = vmatprep.subr.mxu0 0.0
        %721 = vmatpush1.xpose.msra.mxu0 0.0
        %722 = vmatprep.subr.mxu0 0.0
        %723 = vmatpush1.xpose.msra.mxu0 0.0
        %724 = vmatprep.subr.mxu0 0.0
        %725 = vmatpush1.xpose.msra.mxu0 0.0
        %726 = vmatprep.subr.mxu0 0.0
        %727 = vmatpush1.xpose.msra.mxu0 0.0
        %728 = vmatprep.subr.mxu0 0.0
        %729 = vmatpush1.xpose.msra.mxu0 0.0
        %730 = vmatprep.subr.mxu0 0.0
        %731 = vmatpush1.xpose.msra.mxu0 0.0
        %732 = vmatprep.subr.mxu0 0.0
        %733 = vmatpush1.xpose.msra.mxu0 0.0
        %734 = vmatprep.subr.mxu0 0.0
        %735 = vmatpush1.xpose.msra.mxu0 0.0
        %736 = vmatprep.subr.mxu0 0.0
        %737 = vmatpush1.xpose.msra.mxu0 0.0
        %738 = vmatprep.subr.mxu0 0.0
        %739 = vmatpush1.xpose.msra.mxu0 0.0
        %740 = vmatprep.subr.mxu0 0.0
        %741 = vmatpush1.xpose.msra.mxu0 0.0
        %742 = vmatprep.subr.mxu0 0.0
        %743 = vmatpush1.xpose.msra.mxu0 0.0
        %744 = vmatprep.subr.mxu0 0.0
        %745 = vmatpush1.xpose.msra.mxu0 0.0
        %746 = vmatprep.subr.mxu0 0.0
        %747 = vmatpush1.xpose.msra.mxu0 0.0
        %748 = vmatprep.subr.mxu0 0.0
        %749 = vmatpush1.xpose.msra.mxu0 0.0
        %750 = vmatprep.subr.mxu0 0.0
        %751 = vmatpush1.xpose.msra.mxu0 0.0
        %752 = vmatprep.subr.mxu0 0.0
        %753 = vmatpush1.xpose.msra.mxu0 0.0
        %754 = vmatprep.subr.mxu0 0.0
        %755 = vmatpush1.xpose.msra.mxu0 0.0
        %756 = vmatprep.subr.mxu0 0.0
        %757 = vmatpush1.xpose.msra.mxu0 0.0
        %758 = vmatprep.subr.mxu0 0.0
        %759 = vmatpush1.xpose.msra.mxu0 0.0
        %760 = vmatprep.subr.mxu0 0.0
        %761 = vmatpush1.xpose.msra.mxu0 0.0
        %762 = vmatprep.subr.mxu0 0.0
        %763 = vmatpush1.xpose.msra.mxu0 0.0
        %764 = vmatprep.subr.mxu0 0.0
        %765 = vmatpush1.xpose.msra.mxu0 0.0
        %766 = vmatprep.subr.mxu0 0.0
        %767 = vmatpush1.xpose.msra.mxu0 0.0
        %768 = vmatprep.subr.mxu0 0.0
        %769 = vmatpush1.xpose.msra.mxu0 0.0
        %770 = vmatprep.subr.mxu0 0.0
        %771 = vmatpush1.xpose.msra.mxu0 0.0
        %772 = vmatprep.subr.mxu0 0.0
        %773 = vmatpush1.xpose.msra.mxu0 0.0
        %774 = vmatprep.subr.mxu0 0.0
        %775 = vmatpush1.xpose.msra.mxu0 0.0
        %776 = vmatprep.subr.mxu0 0.0
        %777 = vmatpush1.xpose.msra.mxu0 0.0
        %778 = vmatprep.subr.mxu0 0.0
        %779 = vmatpush1.xpose.msra.mxu0 0.0
        %780 = vmatprep.subr.mxu0 0.0
        %781 = vmatpush1.xpose.msra.mxu0 0.0
        %782 = vmatprep.mubr.f32.mxu0 0.0
        %783 = vmatmul.mubr.f32.gmra.mrb[0].mxu0 %v713
        %v784 = vpop.f32.mrb[0].mxu0
        %v785 = vadd.f32 0.0, %v784
        %v786 = vpop.f32.mrb[0].mxu0
        %787 = vdwg.mxu0
        %s788 = smul.u32 %s27, 8
        %v789 = vlaneseq
        %v790 = vshrl.u32 %v789, 7
        %v791 = vstv %s788
        %v792 = vadd.s32 %v791, %v790
        %v793 = vlaneseq
        %v794 = vand.u32 %v793, 127
        %v795 = vstv %s545
        %v796 = vadd.s32 %v795, %v794
        %vm797 = vcmp.le.s32.totalorder %v796, %v792
        %v798 = vsel %vm797, %v785, -1e+30
        %v799 = vld [vmem:[#allocation2] sm:$0xff]
        %v800 = vsel %vm557, %v798, -inf
        %801 = vmax.xlane.f32.xlu0 %v800
        %v802 = vpop.xlane.xlu0 %801
        %v803 = vmax.f32 %v799, %v802
        %v804 = vsub.f32 %v799, %v803
        %v805 = vmul.f32 %v804, 1.442695
        %v806 = vpow.pop %v805
        %808 = vset.pattern.permute.xlu0 0
        %809 = vperm.xlu0 %808, %v803
        %v810 = vpop.permute.xlu0 %809
        %v812 = vsub.f32 %v798, %v810
        %v813 = vmul.f32 %v812, 1.442695
        %v814 = vpow.pop %v813
        %v815 = vld [vmem:[#allocation3] sm:$0xff]
        %v816 = vmul.f32 %v806, %v815
        %v817 = vsel %vm557, %v814, 0.0
        %818 = vadd.xlane.f32.xlu0 %v817
        %v819 = vpop.xlane.xlu0 %818
        %v820 = vadd.f32 %v816, %v819
        %vm821 = vcmask 7168
        %822 = vst.msk [vmem:[#allocation3] sm:$0xff] %vm821, %v820
        %v823 = vld [vmem:[#allocation4] sm:$0xff]
        %825 = vset.pattern.permute.xlu0 0
        %826 = vperm.xlu0 %825, %v806
        %v827 = vpop.permute.xlu0 %826
        %v829 = vmul.f32 %v827, %v823
        %v830 = vld [vmem:[%s507] sm:$0xff]
        %v832 = vsel %vm557, %v814, 0
        %834 = vmatprep.subr.mxu0 0.0
        %835 = vmatpush1.msra.mxu0 %v830
        %836 = vmatprep.subr.mxu0 0.0
        %837 = vmatpush1.msra.mxu0 0.0
        %838 = vmatprep.subr.mxu0 0.0
        %839 = vmatpush1.msra.mxu0 0.0
        %840 = vmatprep.subr.mxu0 0.0
        %841 = vmatpush1.msra.mxu0 0.0
        %842 = vmatprep.subr.mxu0 0.0
        %843 = vmatpush1.msra.mxu0 0.0
        %844 = vmatprep.subr.mxu0 0.0
        %845 = vmatpush1.msra.mxu0 0.0
        %846 = vmatprep.subr.mxu0 0.0
        %847 = vmatpush1.msra.mxu0 0.0
        %848 = vmatprep.subr.mxu0 0.0
        %849 = vmatpush1.msra.mxu0 0.0
        %850 = vmatprep.subr.mxu0 0.0
        %851 = vmatpush1.msra.mxu0 0.0
        %852 = vmatprep.subr.mxu0 0.0
        %853 = vmatpush1.msra.mxu0 0.0
        %854 = vmatprep.subr.mxu0 0.0
        %855 = vmatpush1.msra.mxu0 0.0
        %856 = vmatprep.subr.mxu0 0.0
        %857 = vmatpush1.msra.mxu0 0.0
        %858 = vmatprep.subr.mxu0 0.0
        %859 = vmatpush1.msra.mxu0 0.0
        %860 = vmatprep.subr.mxu0 0.0
        %861 = vmatpush1.msra.mxu0 0.0
        %862 = vmatprep.subr.mxu0 0.0
        %863 = vmatpush1.msra.mxu0 0.0
        %864 = vmatprep.subr.mxu0 0.0
        %865 = vmatpush1.msra.mxu0 0.0
        %866 = vmatprep.subr.mxu0 0.0
        %867 = vmatpush1.msra.mxu0 0.0
        %868 = vmatprep.subr.mxu0 0.0
        %869 = vmatpush1.msra.mxu0 0.0
        %870 = vmatprep.subr.mxu0 0.0
        %871 = vmatpush1.msra.mxu0 0.0
        %872 = vmatprep.subr.mxu0 0.0
        %873 = vmatpush1.msra.mxu0 0.0
        %874 = vmatprep.subr.mxu0 0.0
        %875 = vmatpush1.msra.mxu0 0.0
        %876 = vmatprep.subr.mxu0 0.0
        %877 = vmatpush1.msra.mxu0 0.0
        %878 = vmatprep.subr.mxu0 0.0
        %879 = vmatpush1.msra.mxu0 0.0
        %880 = vmatprep.subr.mxu0 0.0
        %881 = vmatpush1.msra.mxu0 0.0
        %882 = vmatprep.subr.mxu0 0.0
        %883 = vmatpush1.msra.mxu0 0.0
        %884 = vmatprep.subr.mxu0 0.0
        %885 = vmatpush1.msra.mxu0 0.0
        %886 = vmatprep.subr.mxu0 0.0
        %887 = vmatpush1.msra.mxu0 0.0
        %888 = vmatprep.subr.mxu0 0.0
        %889 = vmatpush1.msra.mxu0 0.0
        %890 = vmatprep.subr.mxu0 0.0
        %891 = vmatpush1.msra.mxu0 0.0
        %892 = vmatprep.subr.mxu0 0.0
        %893 = vmatpush1.msra.mxu0 0.0
        %894 = vmatprep.subr.mxu0 0.0
        %895 = vmatpush1.msra.mxu0 0.0
        %896 = vmatprep.subr.mxu0 0.0
        %897 = vmatpush1.msra.mxu0 0.0
        %898 = vmatprep.mubr.f32.mxu0 0.0
        %899 = vmatmul.mubr.f32.gmra.mrb[0].mxu0 %v832
        %v900 = vpop.f32.mrb[0].mxu0
        %v901 = vadd.f32 0.0, %v900
        %v902 = vpop.f32.mrb[0].mxu0
        %903 = vdwg.mxu0
        %v904 = vadd.f32 %v829, %v901
        %905 = vst.msk [vmem:[#allocation4] sm:$0xff] %vm557, %v904
        %906 = vst.msk [vmem:[#allocation2] sm:$0xff] %vm821, %v803
      $region60: #{rectified_attention_forward.4} parent=51 // pred_fallthru
        _
      // Predicated region
      $region61: #{rectified_attention_forward.4} parent=51 // pred_check
        %p907 = pneg %p536
      $region62: #{rectified_attention_forward.4} parent=51 // pred_check_branch
        %909 = sbr.rel (%p907) target = $region64
      $region63: #{rectified_attention_forward.4} parent=51 // pred_region
        %v910 = vld [vmem:[#allocation3] sm:$0xff]
        %v911 = vrcp.pop %v910
        %v912 = vld [vmem:[#allocation4] sm:$0xff]
        %914 = vset.pattern.permute.xlu0 0
        %915 = vperm.xlu0 %914, %v911
        %v916 = vpop.permute.xlu0 %915
        %v918 = vmul.f32 %v912, %v916
        %vm919 = vcmask 64512
        %920 = vst.msk [vmem:[%s535] sm:$0xff] %vm919, %v918
      $region64: #{rectified_attention_forward.4} parent=51 // pred_fallthru
        _
      %p921 = scmp.lt.s32.totalorder %s25, 1
      %s922 = scalar_select %p921, %s25, 1
      %p923 = scmp.lt.s32.totalorder %s26, 3
      %s924 = scalar_select %p923, %s26, 3
      %p925 = scmp.lt.s32.totalorder %s27, 0
      %s926 = scalar_select %p925, %s27, 0
      %s927 = sadd.s32 %s926, %s924
      %s928 = smul.addr %s922, 4
      %s929 = sadd.s32 %s927, %s928
      %s930 = smul.addr %s929, 8
      %s931 = scalar_lea.vmem %s8, %s930
      // Predicated region
      $region65: #{rectified_attention_forward.4} parent=51 // pred_check
        %p932 = pneg %p286
      $region66: #{rectified_attention_forward.4} parent=51 // pred_check_branch
        %934 = sbr.rel (%p932) target = $region68
      $region67: #{rectified_attention_forward.4} parent=51 // pred_region
        _
      $region68: #{rectified_attention_forward.4} parent=51 // pred_fallthru
        _
    $region52: #{rectified_attention_forward.4} parent=5 // pred_fallthru
      _
    %p935 = scmp.le.s32.totalorder 2, %s14
    // Predicated region
    $region69: #{rectified_attention_forward.4} parent=5 // pred_check
      %p936 = pneg %p935
    $region70: #{rectified_attention_forward.4} parent=5 // pred_check_branch
      %938 = sbr.rel (%p936) target = $region72
    $region71: #{rectified_attention_forward.4} parent=5 // pred_region
      %s939 = ssub.s32 %s14, 2
      // Predicated region
      $region73: #{rectified_attention_forward.4} parent=71 // pred_check
        %p940 = pneg %p292
      $region74: #{rectified_attention_forward.4} parent=71 // pred_check_branch
        %942 = sbr.rel (%p940) target = $region76
      $region75: #{rectified_attention_forward.4} parent=71 // pred_region
        %p943 = scmp.lt.s32.totalorder %s29, 1
        %s944 = scalar_select %p943, %s29, 1
        %p945 = scmp.lt.s32.totalorder %s30, 3
        %s946 = scalar_select %p945, %s30, 3
        %p947 = scmp.lt.s32.totalorder %s31, 0
        %s948 = scalar_select %p947, %s31, 0
        %s949 = sadd.s32 %s948, %s946
        %s950 = smul.addr %s944, 4
        %s951 = sadd.s32 %s949, %s950
        %s952 = smul.addr %s951, 8
        %s953 = scalar_lea.vmem %s8, %s952
      $region76: #{rectified_attention_forward.4} parent=71 // pred_fallthru
        _
    $region72: #{rectified_attention_forward.4} parent=5 // pred_fallthru
      _
  $region6: #{rectified_attention_forward.4} parent=0 // loop_footer
    %s18 = sadd.s32 1, %s14
  $region7: #{rectified_attention_forward.4} parent=0 // loop_footer_branch
    %13 = sbr.rel target = $region3
  $region8: #{rectified_attention_forward.4} parent=0 // loop_exit
    _

</llo_original>
